<compile_context>
chip_gen: v6e
topology: v6e:2x2x1
jax: 0.10.0
libtpu: 0.0.40
codegen_flags: <defaults>
</compile_context>

<pallas_src>
import jax
import jax.numpy as jnp
from jax import lax
from jax.experimental import pallas as pl
from jax.experimental.pallas import tpu as pltpu
import numpy as np

_LANE = 128
_SUB = 16          # row-count alignment: 16 keeps bf16 (16,128) tiles and f32 (8,128) tiles whole
_HI = lax.Precision.HIGHEST  # reference only


def _ceil_to(x, m):
    return ((x + m - 1) // m) * m


# ------------------------------- fused kernel ---------------------------------

def dpcnn_fused_kernel(x_ref, wr_ref, br_ref, wc_ref, bc_ref, wfc_ref, bfc_ref, o_ref):
    """Whole DPCNN head for a block of TB batch elements (grid is over batch blocks).

    x_ref : (TB, S, Hp)  bf16  encoder output, hidden dim zero-padded to Hp (lane-dense)
    wr_ref: (3*Hp, Fp)   bf16  conv_region weights, 3 height-taps folded into contraction
    wc_ref: (3*Fp, Fp)   bf16  conv (3,1) weights, 3 height-taps folded into contraction
    br/bc : (1, Fp)      f32   biases (zero in padded channels)
    wfc   : (Fp, Cp)     bf16, bfc: (1, Cp) f32   (classes padded to a lane multiple)
    o_ref : (TB, 1, Cp)  f32   logits for this batch block

    Activations are carried as (TB, Lpad, Fp) with Lpad a multiple of 16; only rows [0:L]
    are meaningful and padded rows are never read back as real data.  That makes every
    (TB, Lpad, K) <-> (TB*Lpad, K) reshape around a matmul layout-preserving, so each conv
    is ONE MXU matmul with M = TB*Lpad.
    """
    x = x_ref[...].astype(jnp.float32)   # bf16 over DMA (half bandwidth), f32 in registers
    wr = wr_ref[...]
    br = br_ref[...]
    wc = wc_ref[...]
    bc = bc_ref[...]
    TB, S, Hp = x.shape
    Fp = bc.shape[-1]
    Cp = bfc_ref.shape[-1]

    def conv_mm(p, w, b):
        # p: (TB, Lp+2, K) f32 with Lp % 16 == 0.
        # (3, K) conv folded into ONE (TB*Lp, 3K) @ (3K, F) bf16 matmul, f32 accumulate.
        Lp = p.shape[1] - 2
        K = p.shape[2]
        # TODO(synk): casting to bf16 *before* this tap concat would halve the concat copy
        # bytes; kept f32-then-cast until a bundle dump confirms packed bf16 offset-1 row
        # shifts do not add sublane-packing ops.
        taps = jnp.concatenate([p[:, 0:Lp], p[:, 1:Lp + 1], p[:, 2:Lp + 2]],
                               axis=-1).astype(jnp.bfloat16)          # (TB, Lp, 3K)
        out = jnp.dot(taps.reshape(TB * Lp, 3 * K), w,
                      preferred_element_type=jnp.float32) + b          # (TB*Lp, F)
        return out.reshape(TB, Lp, w.shape[-1])

    def conv3(y, L):
        # padd1 ([0,0,1,1]) -> ReLU -> Conv2d(F, F, (3,1)).  Rows [0:L] of y are valid.
        Lp = _ceil_to(L, _SUB)
        z = jnp.maximum(y[:, 0:L], 0.0)                                # ReLU before padding
        p = jnp.concatenate(
            [jnp.zeros((TB, 1, Fp), jnp.float32), z,
             jnp.zeros((TB, Lp + 1 - L, Fp), jnp.float32)], axis=1)    # (TB, Lp+2, Fp)
        return conv_mm(p, wc, bc)                                      # rows [0:L] valid

    def maxpool3_s2(y, L):
        # padd2 ([0,0,0,1]) -> MaxPool2d((3,1), stride=2).  Rows [0:L] of y are valid.
        Lo = L // 2
        Lop = _ceil_to(Lo, _SUB)
        n = 2 * Lo + 1                       # last window may read the bottom zero-pad row
        pad = n - L                          # 1 if L even, 0 if L odd
        xp = y[:, 0:L]
        if pad:
            xp = jnp.concatenate([xp, jnp.zeros((TB, pad, Fp), jnp.float32)], axis=1)
        m = jnp.maximum(jnp.maximum(xp[:, 0:n - 2], xp[:, 1:n - 1]), xp[:, 2:n])
        # keep every second stride-1 window; L is tiny & static -> unrolled shifted slices.
        rows = [m[:, 2 * j:2 * j + 1] for j in range(Lo)]
        if Lop > Lo:
            rows.append(jnp.zeros((TB, Lop - Lo, Fp), jnp.float32))
        return jnp.concatenate(rows, axis=1), Lo    # (TB, Lop, Fp), rows [0:Lo] valid

    # conv_region: Conv2d(1, F, (3, H)) valid conv over the sequence.
    L = S - 2
    Lp0 = _ceil_to(L, _SUB)
    if Lp0 + 2 > S:
        x = jnp.concatenate(
            [x, jnp.zeros((TB, Lp0 + 2 - S, Hp), jnp.float32)], axis=1)
    y = conv_mm(x, wr, br)      # (TB, Lp0, Fp), rows [0:L] valid
    y = conv3(y, L)
    y = conv3(y, L)

    # DPCNN pyramid — trip count is static given S, unrolled at trace time.
    while L > 2:
        px, L = maxpool3_s2(y, L)
        y = conv3(px, L)
        y = conv3(y, L)
        y = y + px               # residual in f32

    # out.squeeze() (final L == 1) + fc -> lane-dense (TB, 1, Cp) logits.
    Lf = y.shape[1]
    yl = y.astype(jnp.bfloat16).reshape(TB * Lf, Fp)
    logits = jnp.dot(yl, wfc_ref[...], preferred_element_type=jnp.float32) + bfc_ref[...]
    o_ref[...] = logits.reshape(TB, Lf, Cp)[:, 0:1, :]


# --------------------------------- wrapper -------------------------------------

def _pick_tb(batch, seq):
    """Batch-block size: fill the MXU M dimension (TB*Lpad >= 256 for v6e/v7x, which also
    covers v5e's 128) while keeping >= 2 grid steps so the parallel batch axis uses both
    v7x TensorCores, and TB | batch so blocks are never ragged."""
    lpad = _ceil_to(seq - 2, _SUB)
    tb = max(1, (256 + lpad - 1) // lpad)
    tb = min(tb, max(1, batch // 2))
    tb = max(1, min(tb, batch))
    while batch % tb:
        tb -= 1
    return tb


def dpcnn_fused(x, wr, br, wc, bc, wfc, bfc):
    B, S, Hp = x.shape
    Cp = wfc.shape[-1]

    # The PyTorch head ends with `.squeeze()` + Linear(num_filters, num_classes),
    # which requires the pyramid to terminate at height 1 (e.g. S = 16).
    L = S - 2
    while L > 2:
        L //= 2
    assert L == 1, f"DPCNN pyramid terminates at L={L}, expected 1"

    tb = _pick_tb(B, S)
    grid_spec = pltpu.PrefetchScalarGridSpec(
        num_scalar_prefetch=0,
        grid=(B // tb,),
        in_specs=[
            pl.BlockSpec((tb, S, Hp), lambda b: (b, 0, 0)),     # batch block of encoder out
            pl.BlockSpec(wr.shape, lambda b: (0, 0)),
            pl.BlockSpec(br.shape, lambda b: (0, 0)),
            pl.BlockSpec(wc.shape, lambda b: (0, 0)),
            pl.BlockSpec(bc.shape, lambda b: (0, 0)),
            pl.BlockSpec(wfc.shape, lambda b: (0, 0)),
            pl.BlockSpec(bfc.shape, lambda b: (0, 0)),
        ],
        out_specs=pl.BlockSpec((tb, 1, Cp), lambda b: (b, 0, 0)),
    )
    out = pl.pallas_call(
        dpcnn_fused_kernel,
        out_shape=jax.ShapeDtypeStruct((B, 1, Cp), jnp.float32),
        grid_spec=grid_spec,
        compiler_params=pltpu.CompilerParams(
            dimension_semantics=("parallel",)),      # batch-parallel -> both v7x TensorCores
    )(x, wr, br, wc, bc, wfc, bfc)
    return out[:, 0, :]                              # (B, Cp)


@jax.jit
def model_forward(content, mask, params):
    del mask  # TODO(synk): mask is consumed only by the (un-reproducible) BERT encoder.
    x = params["emb"][content] + params["pos"]       # (B, S, H) BERT stand-in
    B, S, H = x.shape
    F = params["wc"].shape[-1]
    C = params["wfc"].shape[-1]
    Hp = _ceil_to(H, _LANE)
    Fp = _ceil_to(F, _LANE)
    Cp = _ceil_to(C, _LANE)

    # Lane-dense, tap-folded, bf16 weight layout.  Zero-padded channels stay exactly zero
    # through conv / relu / maxpool / residual, so the logits are unchanged; padded class
    # columns are zero and sliced away below.
    # NOTE: production DPCNN typically uses num_filters=250 -> Fp=256 (little padding
    # waste); at tiny F the convs are cheap and the batch-blocked grid is what matters.
    xpad = jnp.pad(x, ((0, 0), (0, 0), (0, Hp - H))).astype(jnp.bfloat16)
    wr = jnp.pad(params["wr"], ((0, 0), (0, Hp - H), (0, Fp - F))
                 ).reshape(3 * Hp, Fp).astype(jnp.bfloat16)
    br = jnp.pad(params["br"], ((0, 0), (0, 0), (0, Fp - F))).reshape(1, Fp)
    wc = jnp.pad(params["wc"], ((0, 0), (0, Fp - F), (0, Fp - F))
                 ).reshape(3 * Fp, Fp).astype(jnp.bfloat16)
    bc = jnp.pad(params["bc"], ((0, 0), (0, 0), (0, Fp - F))).reshape(1, Fp)
    wfc = jnp.pad(params["wfc"], ((0, Fp - F), (0, Cp - C))).astype(jnp.bfloat16)
    bfc = jnp.pad(params["bfc"], ((0, 0), (0, Cp - C)))
    logits = dpcnn_fused(xpad, wr, br, wc, bc, wfc, bfc)   # (B, Cp)
    return logits[:, :C]


# --------------------------- pure-JAX reference --------------------------------

def ref_forward(content, params):
    x = params["emb"][content] + params["pos"]
    wr, br, wc, bc = params["wr"], params["br"], params["wc"], params["bc"]

    def conv_region(t):
        L = t.shape[1] - 2
        return sum(jnp.einsum("blh,hf->blf", t[:, k:k + L, :], wr[k], precision=_HI)
                   for k in range(3)) + br

    def conv3(tp):
        L = tp.shape[1] - 2
        return sum(jnp.einsum("blc,cf->blf", tp[:, k:k + L, :], wc[k], precision=_HI)
                   for k in range(3)) + bc

    pad1 = lambda t: jnp.pad(t, ((0, 0), (1, 1), (0, 0)))
    pad2 = lambda t: jnp.pad(t, ((0, 0), (0, 1), (0, 0)))

    def maxpool(t):
        L = t.shape[1]
        Lo = (L - 3) // 2 + 1
        return jnp.stack([t[:, 2 * j:2 * j + 3, :].max(axis=1) for j in range(Lo)], axis=1)

    y = conv_region(x)
    y = conv3(jax.nn.relu(pad1(y)))
    y = conv3(jax.nn.relu(pad1(y)))
    while y.shape[1] > 2:
        px = maxpool(pad2(y))
        z = conv3(jax.nn.relu(pad1(px)))
        z = conv3(jax.nn.relu(pad1(z)))
        y = z + px
    y = y.reshape(y.shape[0], -1)
    return jnp.dot(y, params["wfc"], precision=_HI) + params["bfc"]


# ----------------------------------- main ---------------------------------------

if __name__ == "__main__":
    # small shapes: batch=2, seq=16, bert_hidden=32, num_filters=8, num_classes=4
    B, S, H, F, C, V = 2, 16, 32, 8, 4, 30

    key = jax.random.PRNGKey(0)
    ks = jax.random.split(key, 8)
    params = dict(
        emb=jax.random.normal(ks[0], (V, H), jnp.float32) * 0.1,     # BERT stand-in embedding
        pos=jax.random.normal(ks[1], (S, H), jnp.float32) * 0.02,    # BERT stand-in positions
        wr=jax.random.normal(ks[2], (3, H, F), jnp.float32) * 0.1,   # conv_region.weight[f,0,k,h] -> wr[k,h,f]
        br=jax.random.normal(ks[3], (1, 1, F), jnp.float32) * 0.1,   # conv_region.bias
        wc=jax.random.normal(ks[4], (3, F, F), jnp.float32) * 0.1,   # conv.weight[f,c,k,0] -> wc[k,c,f]
        bc=jax.random.normal(ks[5], (1, 1, F), jnp.float32) * 0.1,   # conv.bias
        wfc=jax.random.normal(ks[6], (F, C), jnp.float32) * 0.1,     # fc.weight.T
        bfc=jax.random.normal(ks[7], (1, C), jnp.float32) * 0.1,     # fc.bias
    )

    content = jax.random.randint(jax.random.PRNGKey(1), (B, S), 0, V)  # x[0]: token ids
    mask = jnp.ones((B, S), jnp.int32)                                  # x[2]: attention mask

    out = model_forward(content, mask, params)
    out = jax.block_until_ready(out)
    assert out.shape == (B, C), out.shape

    # bf16 MXU operands / bf16 encoder activations (f32 accumulation) -> compare against an
    # f32/HIGHEST reference with relaxed tolerances.
    ref = ref_forward(content, params)
    np.testing.assert_allclose(np.asarray(out), np.asarray(ref), rtol=2e-2, atol=2e-2)

    print("KERNEL_OK")
</pallas_src>

<mosaic_0001>
module attributes {stable_mosaic.version = 11 : i64} {
  func.func @dpcnn_fused_kernel(%arg0: i32, %arg1: memref<1x16x128xbf16, #tpu.memory_space<vmem>>, %arg2: memref<384x128xbf16, #tpu.memory_space<vmem>>, %arg3: memref<1x128xf32, #tpu.memory_space<vmem>>, %arg4: memref<384x128xbf16, #tpu.memory_space<vmem>>, %arg5: memref<1x128xf32, #tpu.memory_space<vmem>>, %arg6: memref<128x128xbf16, #tpu.memory_space<vmem>>, %arg7: memref<1x128xf32, #tpu.memory_space<vmem>>, %arg8: memref<1x1x128xf32, #tpu.memory_space<vmem>>) attributes {dimension_semantics = [#tpu.dimension_semantics<parallel>], iteration_bounds = array<i64: 2>, scalar_prefetch = 0 : i64, scratch_operands = 0 : i64, tpu.core_type = #tpu.core_type<tc>, window_params = [{transform_indices = @transform_0, window_bounds = array<i64: 1, 16, 128>}, {pipeline_mode = #tpu.pipeline_mode<synchronous>, transform_indices = @transform_1, window_bounds = array<i64: 384, 128>}, {pipeline_mode = #tpu.pipeline_mode<synchronous>, transform_indices = @transform_2, window_bounds = array<i64: 1, 128>}, {pipeline_mode = #tpu.pipeline_mode<synchronous>, transform_indices = @transform_3, window_bounds = array<i64: 384, 128>}, {pipeline_mode = #tpu.pipeline_mode<synchronous>, transform_indices = @transform_4, window_bounds = array<i64: 1, 128>}, {pipeline_mode = #tpu.pipeline_mode<synchronous>, transform_indices = @transform_5, window_bounds = array<i64: 128, 128>}, {pipeline_mode = #tpu.pipeline_mode<synchronous>, transform_indices = @transform_6, window_bounds = array<i64: 1, 128>}, {transform_indices = @transform_7, window_bounds = array<i64: 1, 1, 128>}]} {
    %c0 = arith.constant 0 : index
    %c0_0 = arith.constant 0 : index
    %c0_1 = arith.constant 0 : index
    %0 = vector.load %arg1[%c0, %c0_0, %c0_1] : memref<1x16x128xbf16, #tpu.memory_space<vmem>>, vector<1x16x128xbf16>
    %1 = arith.extf %0 : vector<1x16x128xbf16> to vector<1x16x128xf32>
    %c0_2 = arith.constant 0 : index
    %c0_3 = arith.constant 0 : index
    %2 = vector.load %arg2[%c0_2, %c0_3] : memref<384x128xbf16, #tpu.memory_space<vmem>>, vector<384x128xbf16>
    %c0_4 = arith.constant 0 : index
    %c0_5 = arith.constant 0 : index
    %3 = vector.load %arg3[%c0_4, %c0_5] : memref<1x128xf32, #tpu.memory_space<vmem>>, vector<1x128xf32>
    %c0_6 = arith.constant 0 : index
    %c0_7 = arith.constant 0 : index
    %4 = vector.load %arg4[%c0_6, %c0_7] : memref<384x128xbf16, #tpu.memory_space<vmem>>, vector<384x128xbf16>
    %c0_8 = arith.constant 0 : index
    %c0_9 = arith.constant 0 : index
    %5 = vector.load %arg5[%c0_8, %c0_9] : memref<1x128xf32, #tpu.memory_space<vmem>>, vector<1x128xf32>
    %cst = arith.constant 0.000000e+00 : f32
    %6 = vector.broadcast %cst : f32 to vector<1x2x128xf32>
    %7 = tpu.concatenate %1, %6 in 1 : vector<1x16x128xf32>, vector<1x2x128xf32> -> vector<1x18x128xf32>
    %8 = vector.extract_strided_slice %7 {offsets = [0, 0, 0], sizes = [1, 16, 128], strides = [1, 1, 1]} : vector<1x18x128xf32> to vector<1x16x128xf32>
    %9 = vector.extract_strided_slice %7 {offsets = [0, 1, 0], sizes = [1, 16, 128], strides = [1, 1, 1]} : vector<1x18x128xf32> to vector<1x16x128xf32>
    %10 = vector.extract_strided_slice %7 {offsets = [0, 2, 0], sizes = [1, 16, 128], strides = [1, 1, 1]} : vector<1x18x128xf32> to vector<1x16x128xf32>
    %11 = tpu.concatenate %8, %9, %10 in 2 : vector<1x16x128xf32>, vector<1x16x128xf32>, vector<1x16x128xf32> -> vector<1x16x384xf32>
    %12 = arith.truncf %11 : vector<1x16x384xf32> to vector<1x16x384xbf16>
    %13 = vector.shape_cast %12 : vector<1x16x384xbf16> to vector<16x384xbf16>
    %cst_10 = arith.constant dense<0.000000e+00> : vector<16x128xf32>
    %14 = tpu.matmul %13, %2, %cst_10 {dimension_numbers = #tpu.dot_dimension_numbers<[1], [0], [0], [1], [0, 0, 1, 1], [], []>} : vector<16x384xbf16>, vector<384x128xbf16>, vector<16x128xf32> -> vector<16x128xf32>
    %15 = vector.broadcast %3 : vector<1x128xf32> to vector<16x128xf32>
    %16 = arith.addf %14, %15 : vector<16x128xf32>
    %17 = vector.shape_cast %16 : vector<16x128xf32> to vector<1x16x128xf32>
    %18 = vector.extract_strided_slice %17 {offsets = [0, 0, 0], sizes = [1, 14, 128], strides = [1, 1, 1]} : vector<1x16x128xf32> to vector<1x14x128xf32>
    %cst_11 = arith.constant 0.000000e+00 : f32
    %19 = vector.broadcast %cst_11 : f32 to vector<1x14x128xf32>
    %20 = arith.maximumf %18, %19 : vector<1x14x128xf32>
    %cst_12 = arith.constant 0.000000e+00 : f32
    %21 = vector.broadcast %cst_12 : f32 to vector<1x1x128xf32>
    %cst_13 = arith.constant 0.000000e+00 : f32
    %22 = vector.broadcast %cst_13 : f32 to vector<1x3x128xf32>
    %23 = tpu.concatenate %21, %20, %22 in 1 : vector<1x1x128xf32>, vector<1x14x128xf32>, vector<1x3x128xf32> -> vector<1x18x128xf32>
    %24 = vector.extract_strided_slice %23 {offsets = [0, 0, 0], sizes = [1, 16, 128], strides = [1, 1, 1]} : vector<1x18x128xf32> to vector<1x16x128xf32>
    %25 = vector.extract_strided_slice %23 {offsets = [0, 1, 0], sizes = [1, 16, 128], strides = [1, 1, 1]} : vector<1x18x128xf32> to vector<1x16x128xf32>
    %26 = vector.extract_strided_slice %23 {offsets = [0, 2, 0], sizes = [1, 16, 128], strides = [1, 1, 1]} : vector<1x18x128xf32> to vector<1x16x128xf32>
    %27 = tpu.concatenate %24, %25, %26 in 2 : vector<1x16x128xf32>, vector<1x16x128xf32>, vector<1x16x128xf32> -> vector<1x16x384xf32>
    %28 = arith.truncf %27 : vector<1x16x384xf32> to vector<1x16x384xbf16>
    %29 = vector.shape_cast %28 : vector<1x16x384xbf16> to vector<16x384xbf16>
    %cst_14 = arith.constant dense<0.000000e+00> : vector<16x128xf32>
    %30 = tpu.matmul %29, %4, %cst_14 {dimension_numbers = #tpu.dot_dimension_numbers<[1], [0], [0], [1], [0, 0, 1, 1], [], []>} : vector<16x384xbf16>, vector<384x128xbf16>, vector<16x128xf32> -> vector<16x128xf32>
    %31 = vector.broadcast %5 : vector<1x128xf32> to vector<16x128xf32>
    %32 = arith.addf %30, %31 : vector<16x128xf32>
    %33 = vector.shape_cast %32 : vector<16x128xf32> to vector<1x16x128xf32>
    %34 = vector.extract_strided_slice %33 {offsets = [0, 0, 0], sizes = [1, 14, 128], strides = [1, 1, 1]} : vector<1x16x128xf32> to vector<1x14x128xf32>
    %cst_15 = arith.constant 0.000000e+00 : f32
    %35 = vector.broadcast %cst_15 : f32 to vector<1x14x128xf32>
    %36 = arith.maximumf %34, %35 : vector<1x14x128xf32>
    %cst_16 = arith.constant 0.000000e+00 : f32
    %37 = vector.broadcast %cst_16 : f32 to vector<1x1x128xf32>
    %cst_17 = arith.constant 0.000000e+00 : f32
    %38 = vector.broadcast %cst_17 : f32 to vector<1x3x128xf32>
    %39 = tpu.concatenate %37, %36, %38 in 1 : vector<1x1x128xf32>, vector<1x14x128xf32>, vector<1x3x128xf32> -> vector<1x18x128xf32>
    %40 = vector.extract_strided_slice %39 {offsets = [0, 0, 0], sizes = [1, 16, 128], strides = [1, 1, 1]} : vector<1x18x128xf32> to vector<1x16x128xf32>
    %41 = vector.extract_strided_slice %39 {offsets = [0, 1, 0], sizes = [1, 16, 128], strides = [1, 1, 1]} : vector<1x18x128xf32> to vector<1x16x128xf32>
    %42 = vector.extract_strided_slice %39 {offsets = [0, 2, 0], sizes = [1, 16, 128], strides = [1, 1, 1]} : vector<1x18x128xf32> to vector<1x16x128xf32>
    %43 = tpu.concatenate %40, %41, %42 in 2 : vector<1x16x128xf32>, vector<1x16x128xf32>, vector<1x16x128xf32> -> vector<1x16x384xf32>
    %44 = arith.truncf %43 : vector<1x16x384xf32> to vector<1x16x384xbf16>
    %45 = vector.shape_cast %44 : vector<1x16x384xbf16> to vector<16x384xbf16>
    %cst_18 = arith.constant dense<0.000000e+00> : vector<16x128xf32>
    %46 = tpu.matmul %45, %4, %cst_18 {dimension_numbers = #tpu.dot_dimension_numbers<[1], [0], [0], [1], [0, 0, 1, 1], [], []>} : vector<16x384xbf16>, vector<384x128xbf16>, vector<16x128xf32> -> vector<16x128xf32>
    %47 = vector.broadcast %5 : vector<1x128xf32> to vector<16x128xf32>
    %48 = arith.addf %46, %47 : vector<16x128xf32>
    %49 = vector.shape_cast %48 : vector<16x128xf32> to vector<1x16x128xf32>
    %50 = vector.extract_strided_slice %49 {offsets = [0, 0, 0], sizes = [1, 14, 128], strides = [1, 1, 1]} : vector<1x16x128xf32> to vector<1x14x128xf32>
    %cst_19 = arith.constant 0.000000e+00 : f32
    %51 = vector.broadcast %cst_19 : f32 to vector<1x1x128xf32>
    %52 = tpu.concatenate %50, %51 in 1 : vector<1x14x128xf32>, vector<1x1x128xf32> -> vector<1x15x128xf32>
    %53 = vector.extract_strided_slice %52 {offsets = [0, 0, 0], sizes = [1, 13, 128], strides = [1, 1, 1]} : vector<1x15x128xf32> to vector<1x13x128xf32>
    %54 = vector.extract_strided_slice %52 {offsets = [0, 1, 0], sizes = [1, 13, 128], strides = [1, 1, 1]} : vector<1x15x128xf32> to vector<1x13x128xf32>
    %55 = arith.maximumf %53, %54 : vector<1x13x128xf32>
    %56 = vector.extract_strided_slice %52 {offsets = [0, 2, 0], sizes = [1, 13, 128], strides = [1, 1, 1]} : vector<1x15x128xf32> to vector<1x13x128xf32>
    %57 = arith.maximumf %55, %56 : vector<1x13x128xf32>
    %58 = vector.extract_strided_slice %57 {offsets = [0, 0, 0], sizes = [1, 1, 128], strides = [1, 1, 1]} : vector<1x13x128xf32> to vector<1x1x128xf32>
    %59 = vector.extract_strided_slice %57 {offsets = [0, 2, 0], sizes = [1, 1, 128], strides = [1, 1, 1]} : vector<1x13x128xf32> to vector<1x1x128xf32>
    %60 = vector.extract_strided_slice %57 {offsets = [0, 4, 0], sizes = [1, 1, 128], strides = [1, 1, 1]} : vector<1x13x128xf32> to vector<1x1x128xf32>
    %61 = vector.extract_strided_slice %57 {offsets = [0, 6, 0], sizes = [1, 1, 128], strides = [1, 1, 1]} : vector<1x13x128xf32> to vector<1x1x128xf32>
    %62 = vector.extract_strided_slice %57 {offsets = [0, 8, 0], sizes = [1, 1, 128], strides = [1, 1, 1]} : vector<1x13x128xf32> to vector<1x1x128xf32>
    %63 = vector.extract_strided_slice %57 {offsets = [0, 10, 0], sizes = [1, 1, 128], strides = [1, 1, 1]} : vector<1x13x128xf32> to vector<1x1x128xf32>
    %64 = vector.extract_strided_slice %57 {offsets = [0, 12, 0], sizes = [1, 1, 128], strides = [1, 1, 1]} : vector<1x13x128xf32> to vector<1x1x128xf32>
    %cst_20 = arith.constant 0.000000e+00 : f32
    %65 = vector.broadcast %cst_20 : f32 to vector<1x9x128xf32>
    %66 = tpu.concatenate %58, %59, %60, %61, %62, %63, %64, %65 in 1 : vector<1x1x128xf32>, vector<1x1x128xf32>, vector<1x1x128xf32>, vector<1x1x128xf32>, vector<1x1x128xf32>, vector<1x1x128xf32>, vector<1x1x128xf32>, vector<1x9x128xf32> -> vector<1x16x128xf32>
    %67 = vector.extract_strided_slice %66 {offsets = [0, 0, 0], sizes = [1, 7, 128], strides = [1, 1, 1]} : vector<1x16x128xf32> to vector<1x7x128xf32>
    %cst_21 = arith.constant 0.000000e+00 : f32
    %68 = vector.broadcast %cst_21 : f32 to vector<1x7x128xf32>
    %69 = arith.maximumf %67, %68 : vector<1x7x128xf32>
    %cst_22 = arith.constant 0.000000e+00 : f32
    %70 = vector.broadcast %cst_22 : f32 to vector<1x1x128xf32>
    %cst_23 = arith.constant 0.000000e+00 : f32
    %71 = vector.broadcast %cst_23 : f32 to vector<1x10x128xf32>
    %72 = tpu.concatenate %70, %69, %71 in 1 : vector<1x1x128xf32>, vector<1x7x128xf32>, vector<1x10x128xf32> -> vector<1x18x128xf32>
    %73 = vector.extract_strided_slice %72 {offsets = [0, 0, 0], sizes = [1, 16, 128], strides = [1, 1, 1]} : vector<1x18x128xf32> to vector<1x16x128xf32>
    %74 = vector.extract_strided_slice %72 {offsets = [0, 1, 0], sizes = [1, 16, 128], strides = [1, 1, 1]} : vector<1x18x128xf32> to vector<1x16x128xf32>
    %75 = vector.extract_strided_slice %72 {offsets = [0, 2, 0], sizes = [1, 16, 128], strides = [1, 1, 1]} : vector<1x18x128xf32> to vector<1x16x128xf32>
    %76 = tpu.concatenate %73, %74, %75 in 2 : vector<1x16x128xf32>, vector<1x16x128xf32>, vector<1x16x128xf32> -> vector<1x16x384xf32>
    %77 = arith.truncf %76 : vector<1x16x384xf32> to vector<1x16x384xbf16>
    %78 = vector.shape_cast %77 : vector<1x16x384xbf16> to vector<16x384xbf16>
    %cst_24 = arith.constant dense<0.000000e+00> : vector<16x128xf32>
    %79 = tpu.matmul %78, %4, %cst_24 {dimension_numbers = #tpu.dot_dimension_numbers<[1], [0], [0], [1], [0, 0, 1, 1], [], []>} : vector<16x384xbf16>, vector<384x128xbf16>, vector<16x128xf32> -> vector<16x128xf32>
    %80 = vector.broadcast %5 : vector<1x128xf32> to vector<16x128xf32>
    %81 = arith.addf %79, %80 : vector<16x128xf32>
    %82 = vector.shape_cast %81 : vector<16x128xf32> to vector<1x16x128xf32>
    %83 = vector.extract_strided_slice %82 {offsets = [0, 0, 0], sizes = [1, 7, 128], strides = [1, 1, 1]} : vector<1x16x128xf32> to vector<1x7x128xf32>
    %cst_25 = arith.constant 0.000000e+00 : f32
    %84 = vector.broadcast %cst_25 : f32 to vector<1x7x128xf32>
    %85 = arith.maximumf %83, %84 : vector<1x7x128xf32>
    %cst_26 = arith.constant 0.000000e+00 : f32
    %86 = vector.broadcast %cst_26 : f32 to vector<1x1x128xf32>
    %cst_27 = arith.constant 0.000000e+00 : f32
    %87 = vector.broadcast %cst_27 : f32 to vector<1x10x128xf32>
    %88 = tpu.concatenate %86, %85, %87 in 1 : vector<1x1x128xf32>, vector<1x7x128xf32>, vector<1x10x128xf32> -> vector<1x18x128xf32>
    %89 = vector.extract_strided_slice %88 {offsets = [0, 0, 0], sizes = [1, 16, 128], strides = [1, 1, 1]} : vector<1x18x128xf32> to vector<1x16x128xf32>
    %90 = vector.extract_strided_slice %88 {offsets = [0, 1, 0], sizes = [1, 16, 128], strides = [1, 1, 1]} : vector<1x18x128xf32> to vector<1x16x128xf32>
    %91 = vector.extract_strided_slice %88 {offsets = [0, 2, 0], sizes = [1, 16, 128], strides = [1, 1, 1]} : vector<1x18x128xf32> to vector<1x16x128xf32>
    %92 = tpu.concatenate %89, %90, %91 in 2 : vector<1x16x128xf32>, vector<1x16x128xf32>, vector<1x16x128xf32> -> vector<1x16x384xf32>
    %93 = arith.truncf %92 : vector<1x16x384xf32> to vector<1x16x384xbf16>
    %94 = vector.shape_cast %93 : vector<1x16x384xbf16> to vector<16x384xbf16>
    %cst_28 = arith.constant dense<0.000000e+00> : vector<16x128xf32>
    %95 = tpu.matmul %94, %4, %cst_28 {dimension_numbers = #tpu.dot_dimension_numbers<[1], [0], [0], [1], [0, 0, 1, 1], [], []>} : vector<16x384xbf16>, vector<384x128xbf16>, vector<16x128xf32> -> vector<16x128xf32>
    %96 = vector.broadcast %5 : vector<1x128xf32> to vector<16x128xf32>
    %97 = arith.addf %95, %96 : vector<16x128xf32>
    %98 = vector.shape_cast %97 : vector<16x128xf32> to vector<1x16x128xf32>
    %99 = arith.addf %98, %66 : vector<1x16x128xf32>
    %100 = vector.extract_strided_slice %99 {offsets = [0, 0, 0], sizes = [1, 7, 128], strides = [1, 1, 1]} : vector<1x16x128xf32> to vector<1x7x128xf32>
    %101 = vector.extract_strided_slice %100 {offsets = [0, 0, 0], sizes = [1, 5, 128], strides = [1, 1, 1]} : vector<1x7x128xf32> to vector<1x5x128xf32>
    %102 = vector.extract_strided_slice %100 {offsets = [0, 1, 0], sizes = [1, 5, 128], strides = [1, 1, 1]} : vector<1x7x128xf32> to vector<1x5x128xf32>
    %103 = arith.maximumf %101, %102 : vector<1x5x128xf32>
    %104 = vector.extract_strided_slice %100 {offsets = [0, 2, 0], sizes = [1, 5, 128], strides = [1, 1, 1]} : vector<1x7x128xf32> to vector<1x5x128xf32>
    %105 = arith.maximumf %103, %104 : vector<1x5x128xf32>
    %106 = vector.extract_strided_slice %105 {offsets = [0, 0, 0], sizes = [1, 1, 128], strides = [1, 1, 1]} : vector<1x5x128xf32> to vector<1x1x128xf32>
    %107 = vector.extract_strided_slice %105 {offsets = [0, 2, 0], sizes = [1, 1, 128], strides = [1, 1, 1]} : vector<1x5x128xf32> to vector<1x1x128xf32>
    %108 = vector.extract_strided_slice %105 {offsets = [0, 4, 0], sizes = [1, 1, 128], strides = [1, 1, 1]} : vector<1x5x128xf32> to vector<1x1x128xf32>
    %cst_29 = arith.constant 0.000000e+00 : f32
    %109 = vector.broadcast %cst_29 : f32 to vector<1x13x128xf32>
    %110 = tpu.concatenate %106, %107, %108, %109 in 1 : vector<1x1x128xf32>, vector<1x1x128xf32>, vector<1x1x128xf32>, vector<1x13x128xf32> -> vector<1x16x128xf32>
    %111 = vector.extract_strided_slice %110 {offsets = [0, 0, 0], sizes = [1, 3, 128], strides = [1, 1, 1]} : vector<1x16x128xf32> to vector<1x3x128xf32>
    %cst_30 = arith.constant 0.000000e+00 : f32
    %112 = vector.broadcast %cst_30 : f32 to vector<1x3x128xf32>
    %113 = arith.maximumf %111, %112 : vector<1x3x128xf32>
    %cst_31 = arith.constant 0.000000e+00 : f32
    %114 = vector.broadcast %cst_31 : f32 to vector<1x1x128xf32>
    %cst_32 = arith.constant 0.000000e+00 : f32
    %115 = vector.broadcast %cst_32 : f32 to vector<1x14x128xf32>
    %116 = tpu.concatenate %114, %113, %115 in 1 : vector<1x1x128xf32>, vector<1x3x128xf32>, vector<1x14x128xf32> -> vector<1x18x128xf32>
    %117 = vector.extract_strided_slice %116 {offsets = [0, 0, 0], sizes = [1, 16, 128], strides = [1, 1, 1]} : vector<1x18x128xf32> to vector<1x16x128xf32>
    %118 = vector.extract_strided_slice %116 {offsets = [0, 1, 0], sizes = [1, 16, 128], strides = [1, 1, 1]} : vector<1x18x128xf32> to vector<1x16x128xf32>
    %119 = vector.extract_strided_slice %116 {offsets = [0, 2, 0], sizes = [1, 16, 128], strides = [1, 1, 1]} : vector<1x18x128xf32> to vector<1x16x128xf32>
    %120 = tpu.concatenate %117, %118, %119 in 2 : vector<1x16x128xf32>, vector<1x16x128xf32>, vector<1x16x128xf32> -> vector<1x16x384xf32>
    %121 = arith.truncf %120 : vector<1x16x384xf32> to vector<1x16x384xbf16>
    %122 = vector.shape_cast %121 : vector<1x16x384xbf16> to vector<16x384xbf16>
    %cst_33 = arith.constant dense<0.000000e+00> : vector<16x128xf32>
    %123 = tpu.matmul %122, %4, %cst_33 {dimension_numbers = #tpu.dot_dimension_numbers<[1], [0], [0], [1], [0, 0, 1, 1], [], []>} : vector<16x384xbf16>, vector<384x128xbf16>, vector<16x128xf32> -> vector<16x128xf32>
    %124 = vector.broadcast %5 : vector<1x128xf32> to vector<16x128xf32>
    %125 = arith.addf %123, %124 : vector<16x128xf32>
    %126 = vector.shape_cast %125 : vector<16x128xf32> to vector<1x16x128xf32>
    %127 = vector.extract_strided_slice %126 {offsets = [0, 0, 0], sizes = [1, 3, 128], strides = [1, 1, 1]} : vector<1x16x128xf32> to vector<1x3x128xf32>
    %cst_34 = arith.constant 0.000000e+00 : f32
    %128 = vector.broadcast %cst_34 : f32 to vector<1x3x128xf32>
    %129 = arith.maximumf %127, %128 : vector<1x3x128xf32>
    %cst_35 = arith.constant 0.000000e+00 : f32
    %130 = vector.broadcast %cst_35 : f32 to vector<1x1x128xf32>
    %cst_36 = arith.constant 0.000000e+00 : f32
    %131 = vector.broadcast %cst_36 : f32 to vector<1x14x128xf32>
    %132 = tpu.concatenate %130, %129, %131 in 1 : vector<1x1x128xf32>, vector<1x3x128xf32>, vector<1x14x128xf32> -> vector<1x18x128xf32>
    %133 = vector.extract_strided_slice %132 {offsets = [0, 0, 0], sizes = [1, 16, 128], strides = [1, 1, 1]} : vector<1x18x128xf32> to vector<1x16x128xf32>
    %134 = vector.extract_strided_slice %132 {offsets = [0, 1, 0], sizes = [1, 16, 128], strides = [1, 1, 1]} : vector<1x18x128xf32> to vector<1x16x128xf32>
    %135 = vector.extract_strided_slice %132 {offsets = [0, 2, 0], sizes = [1, 16, 128], strides = [1, 1, 1]} : vector<1x18x128xf32> to vector<1x16x128xf32>
    %136 = tpu.concatenate %133, %134, %135 in 2 : vector<1x16x128xf32>, vector<1x16x128xf32>, vector<1x16x128xf32> -> vector<1x16x384xf32>
    %137 = arith.truncf %136 : vector<1x16x384xf32> to vector<1x16x384xbf16>
    %138 = vector.shape_cast %137 : vector<1x16x384xbf16> to vector<16x384xbf16>
    %cst_37 = arith.constant dense<0.000000e+00> : vector<16x128xf32>
    %139 = tpu.matmul %138, %4, %cst_37 {dimension_numbers = #tpu.dot_dimension_numbers<[1], [0], [0], [1], [0, 0, 1, 1], [], []>} : vector<16x384xbf16>, vector<384x128xbf16>, vector<16x128xf32> -> vector<16x128xf32>
    %140 = vector.broadcast %5 : vector<1x128xf32> to vector<16x128xf32>
    %141 = arith.addf %139, %140 : vector<16x128xf32>
    %142 = vector.shape_cast %141 : vector<16x128xf32> to vector<1x16x128xf32>
    %143 = arith.addf %142, %110 : vector<1x16x128xf32>
    %144 = vector.extract_strided_slice %143 {offsets = [0, 0, 0], sizes = [1, 3, 128], strides = [1, 1, 1]} : vector<1x16x128xf32> to vector<1x3x128xf32>
    %145 = vector.extract_strided_slice %144 {offsets = [0, 0, 0], sizes = [1, 1, 128], strides = [1, 1, 1]} : vector<1x3x128xf32> to vector<1x1x128xf32>
    %146 = vector.extract_strided_slice %144 {offsets = [0, 1, 0], sizes = [1, 1, 128], strides = [1, 1, 1]} : vector<1x3x128xf32> to vector<1x1x128xf32>
    %147 = arith.maximumf %145, %146 : vector<1x1x128xf32>
    %148 = vector.extract_strided_slice %144 {offsets = [0, 2, 0], sizes = [1, 1, 128], strides = [1, 1, 1]} : vector<1x3x128xf32> to vector<1x1x128xf32>
    %149 = arith.maximumf %147, %148 : vector<1x1x128xf32>
    %cst_38 = arith.constant 0.000000e+00 : f32
    %150 = vector.broadcast %cst_38 : f32 to vector<1x15x128xf32>
    %151 = tpu.concatenate %149, %150 in 1 : vector<1x1x128xf32>, vector<1x15x128xf32> -> vector<1x16x128xf32>
    %152 = vector.extract_strided_slice %151 {offsets = [0, 0, 0], sizes = [1, 1, 128], strides = [1, 1, 1]} : vector<1x16x128xf32> to vector<1x1x128xf32>
    %cst_39 = arith.constant 0.000000e+00 : f32
    %153 = vector.broadcast %cst_39 : f32 to vector<1x1x128xf32>
    %154 = arith.maximumf %152, %153 : vector<1x1x128xf32>
    %cst_40 = arith.constant 0.000000e+00 : f32
    %155 = vector.broadcast %cst_40 : f32 to vector<1x1x128xf32>
    %cst_41 = arith.constant 0.000000e+00 : f32
    %156 = vector.broadcast %cst_41 : f32 to vector<1x16x128xf32>
    %157 = tpu.concatenate %155, %154, %156 in 1 : vector<1x1x128xf32>, vector<1x1x128xf32>, vector<1x16x128xf32> -> vector<1x18x128xf32>
    %158 = vector.extract_strided_slice %157 {offsets = [0, 0, 0], sizes = [1, 16, 128], strides = [1, 1, 1]} : vector<1x18x128xf32> to vector<1x16x128xf32>
    %159 = vector.extract_strided_slice %157 {offsets = [0, 1, 0], sizes = [1, 16, 128], strides = [1, 1, 1]} : vector<1x18x128xf32> to vector<1x16x128xf32>
    %160 = vector.extract_strided_slice %157 {offsets = [0, 2, 0], sizes = [1, 16, 128], strides = [1, 1, 1]} : vector<1x18x128xf32> to vector<1x16x128xf32>
    %161 = tpu.concatenate %158, %159, %160 in 2 : vector<1x16x128xf32>, vector<1x16x128xf32>, vector<1x16x128xf32> -> vector<1x16x384xf32>
    %162 = arith.truncf %161 : vector<1x16x384xf32> to vector<1x16x384xbf16>
    %163 = vector.shape_cast %162 : vector<1x16x384xbf16> to vector<16x384xbf16>
    %cst_42 = arith.constant dense<0.000000e+00> : vector<16x128xf32>
    %164 = tpu.matmul %163, %4, %cst_42 {dimension_numbers = #tpu.dot_dimension_numbers<[1], [0], [0], [1], [0, 0, 1, 1], [], []>} : vector<16x384xbf16>, vector<384x128xbf16>, vector<16x128xf32> -> vector<16x128xf32>
    %165 = vector.broadcast %5 : vector<1x128xf32> to vector<16x128xf32>
    %166 = arith.addf %164, %165 : vector<16x128xf32>
    %167 = vector.shape_cast %166 : vector<16x128xf32> to vector<1x16x128xf32>
    %168 = vector.extract_strided_slice %167 {offsets = [0, 0, 0], sizes = [1, 1, 128], strides = [1, 1, 1]} : vector<1x16x128xf32> to vector<1x1x128xf32>
    %cst_43 = arith.constant 0.000000e+00 : f32
    %169 = vector.broadcast %cst_43 : f32 to vector<1x1x128xf32>
    %170 = arith.maximumf %168, %169 : vector<1x1x128xf32>
    %cst_44 = arith.constant 0.000000e+00 : f32
    %171 = vector.broadcast %cst_44 : f32 to vector<1x1x128xf32>
    %cst_45 = arith.constant 0.000000e+00 : f32
    %172 = vector.broadcast %cst_45 : f32 to vector<1x16x128xf32>
    %173 = tpu.concatenate %171, %170, %172 in 1 : vector<1x1x128xf32>, vector<1x1x128xf32>, vector<1x16x128xf32> -> vector<1x18x128xf32>
    %174 = vector.extract_strided_slice %173 {offsets = [0, 0, 0], sizes = [1, 16, 128], strides = [1, 1, 1]} : vector<1x18x128xf32> to vector<1x16x128xf32>
    %175 = vector.extract_strided_slice %173 {offsets = [0, 1, 0], sizes = [1, 16, 128], strides = [1, 1, 1]} : vector<1x18x128xf32> to vector<1x16x128xf32>
    %176 = vector.extract_strided_slice %173 {offsets = [0, 2, 0], sizes = [1, 16, 128], strides = [1, 1, 1]} : vector<1x18x128xf32> to vector<1x16x128xf32>
    %177 = tpu.concatenate %174, %175, %176 in 2 : vector<1x16x128xf32>, vector<1x16x128xf32>, vector<1x16x128xf32> -> vector<1x16x384xf32>
    %178 = arith.truncf %177 : vector<1x16x384xf32> to vector<1x16x384xbf16>
    %179 = vector.shape_cast %178 : vector<1x16x384xbf16> to vector<16x384xbf16>
    %cst_46 = arith.constant dense<0.000000e+00> : vector<16x128xf32>
    %180 = tpu.matmul %179, %4, %cst_46 {dimension_numbers = #tpu.dot_dimension_numbers<[1], [0], [0], [1], [0, 0, 1, 1], [], []>} : vector<16x384xbf16>, vector<384x128xbf16>, vector<16x128xf32> -> vector<16x128xf32>
    %181 = vector.broadcast %5 : vector<1x128xf32> to vector<16x128xf32>
    %182 = arith.addf %180, %181 : vector<16x128xf32>
    %183 = vector.shape_cast %182 : vector<16x128xf32> to vector<1x16x128xf32>
    %184 = arith.addf %183, %151 : vector<1x16x128xf32>
    %185 = arith.truncf %184 : vector<1x16x128xf32> to vector<1x16x128xbf16>
    %186 = vector.shape_cast %185 : vector<1x16x128xbf16> to vector<16x128xbf16>
    %c0_47 = arith.constant 0 : index
    %c0_48 = arith.constant 0 : index
    %187 = vector.load %arg6[%c0_47, %c0_48] : memref<128x128xbf16, #tpu.memory_space<vmem>>, vector<128x128xbf16>
    %cst_49 = arith.constant dense<0.000000e+00> : vector<16x128xf32>
    %188 = tpu.matmul %186, %187, %cst_49 {dimension_numbers = #tpu.dot_dimension_numbers<[1], [0], [0], [1], [0, 0, 1, 1], [], []>} : vector<16x128xbf16>, vector<128x128xbf16>, vector<16x128xf32> -> vector<16x128xf32>
    %c0_50 = arith.constant 0 : index
    %c0_51 = arith.constant 0 : index
    %189 = vector.load %arg7[%c0_50, %c0_51] : memref<1x128xf32, #tpu.memory_space<vmem>>, vector<1x128xf32>
    %190 = vector.broadcast %189 : vector<1x128xf32> to vector<16x128xf32>
    %191 = arith.addf %188, %190 : vector<16x128xf32>
    %192 = vector.shape_cast %191 : vector<16x128xf32> to vector<1x16x128xf32>
    %193 = vector.extract_strided_slice %192 {offsets = [0, 0, 0], sizes = [1, 1, 128], strides = [1, 1, 1]} : vector<1x16x128xf32> to vector<1x1x128xf32>
    %c0_52 = arith.constant 0 : index
    %c0_53 = arith.constant 0 : index
    %c0_54 = arith.constant 0 : index
    %194 = vector.load %arg8[%c0_52, %c0_53, %c0_54] : memref<1x1x128xf32, #tpu.memory_space<vmem>>, vector<1x1x128xf32>
    tpu.vector_store %arg8[%c0_52, %c0_53, %c0_54], %193 {strides = array<i32>} : memref<1x1x128xf32, #tpu.memory_space<vmem>>, vector<1x1x128xf32>,
    return
  }
  func.func @transform_0(%arg0: i32) -> (i32, i32, i32) {
    %c0_i32 = arith.constant 0 : i32
    %c0_i32_0 = arith.constant 0 : i32
    %c0_i32_1 = arith.constant 0 : i32
    return %arg0, %c0_i32, %c0_i32_0 : i32, i32, i32
  }
  func.func @transform_1(%arg0: i32) -> (i32, i32) {
    %c0_i32 = arith.constant 0 : i32
    %c0_i32_0 = arith.constant 0 : i32
    %c0_i32_1 = arith.constant 0 : i32
    return %c0_i32, %c0_i32_0 : i32, i32
  }
  func.func @transform_2(%arg0: i32) -> (i32, i32) {
    %c0_i32 = arith.constant 0 : i32
    %c0_i32_0 = arith.constant 0 : i32
    %c0_i32_1 = arith.constant 0 : i32
    return %c0_i32, %c0_i32_0 : i32, i32
  }
  func.func @transform_3(%arg0: i32) -> (i32, i32) {
    %c0_i32 = arith.constant 0 : i32
    %c0_i32_0 = arith.constant 0 : i32
    %c0_i32_1 = arith.constant 0 : i32
    return %c0_i32, %c0_i32_0 : i32, i32
  }
  func.func @transform_4(%arg0: i32) -> (i32, i32) {
    %c0_i32 = arith.constant 0 : i32
    %c0_i32_0 = arith.constant 0 : i32
    %c0_i32_1 = arith.constant 0 : i32
    return %c0_i32, %c0_i32_0 : i32, i32
  }
  func.func @transform_5(%arg0: i32) -> (i32, i32) {
    %c0_i32 = arith.constant 0 : i32
    %c0_i32_0 = arith.constant 0 : i32
    %c0_i32_1 = arith.constant 0 : i32
    return %c0_i32, %c0_i32_0 : i32, i32
  }
  func.func @transform_6(%arg0: i32) -> (i32, i32) {
    %c0_i32 = arith.constant 0 : i32
    %c0_i32_0 = arith.constant 0 : i32
    %c0_i32_1 = arith.constant 0 : i32
    return %c0_i32, %c0_i32_0 : i32, i32
  }
  func.func @transform_7(%arg0: i32) -> (i32, i32, i32) {
    %c0_i32 = arith.constant 0 : i32
    %c0_i32_0 = arith.constant 0 : i32
    %c0_i32_1 = arith.constant 0 : i32
    return %arg0, %c0_i32, %c0_i32_0 : i32, i32, i32
  }
}

</mosaic_0001>

<llo_original>
// kernel: model_forward.1
$region0: #{model_forward.1}
  #allocation0 [shape = 'u32[]', space=smem, size = 0x4, offset = 0x4, fixed_abs, tag = 'smem constant byte address 0x4 - core index']
  #allocation1 [shape = 'u32[144,128]{1,0:T(1,128)}', space=vmem, size = 0x12000, scoped, tag = 'internal scratch']
  %s0 = inlined_call_operand.vmem [shape: bf16[2,16,128], index: 0, kind: input, shape index: {}]
  %s1 = inlined_call_operand.vmem [shape: bf16[384,128], index: 1, kind: input, shape index: {}]
  %s2 = inlined_call_operand.vmem [shape: f32[1,128], index: 2, kind: input, shape index: {}]
  %s3 = inlined_call_operand.vmem [shape: bf16[384,128], index: 3, kind: input, shape index: {}]
  %s4 = inlined_call_operand.vmem [shape: f32[1,128], index: 4, kind: input, shape index: {}]
  %s5 = inlined_call_operand.vmem [shape: bf16[128,128], index: 5, kind: input, shape index: {}]
  %s6 = inlined_call_operand.vmem [shape: f32[1,128], index: 6, kind: input, shape index: {}]
  %s7 = inlined_call_operand.hbm [shape: f32[2,1,128], index: 7, kind: output, shape index: {}]
  %s8 = sld [smem:[#allocation0]]
  $region61: #{model_forward.1} parent=0
    _
  %s10 = ssub.s32 1, %s8
  %s11 = scalar_select 0, %s10, %s8
  $region1: #{model_forward.1} parent=0
    #allocation2 [shape = 'u8[1024]{0}', space=vmem, size = 0x400, scoped, tag = 'output window, operand 0']
    #allocation3 [shape = 's32[2]{0}', space=sflag, size = 0x8, scoped, tag = 'scoped memory for model_forward.1']
    %12 = vsyncpa [#allocation3], 0
    %s13 = scalar_lea.sflag [#allocation3], 1
    %14 = vsyncpa %s13, 0
    loop: start=0, step=1, limit=4
    $region2: #{model_forward.1} parent=1 // loop_pre_header
      _
    $region3: #{model_forward.1} parent=1 // loop_header
      %s16 = sphi 0, %s20
      %p17 = scmp.ge.s32.totalorder %s16, 4
      %s26 = sphi 0, %s28
      %s29 = sphi 0, %s26
      %s30 = sphi 0, %s29
      %s46 = sphi 0, %s30
      %s50 = sphi 0, %s50
      %s52 = sphi 0, %s50
      %s53 = sphi 0, %s52
      %s67 = sphi 0, %s53
      %s71 = sphi 0, %s71
      %s73 = sphi 0, %s71
      %s74 = sphi 0, %s73
      %s88 = sphi 0, %s74
      %s92 = sphi 0, %s92
      %s94 = sphi 0, %s92
      %s95 = sphi 0, %s94
      %s109 = sphi 0, %s95
      %s113 = sphi 0, %s113
      %s115 = sphi 0, %s113
      %s116 = sphi 0, %s115
      %s130 = sphi 0, %s116
      %s134 = sphi 0, %s134
      %s136 = sphi 0, %s134
      %s137 = sphi 0, %s136
      %s151 = sphi 0, %s137
      %s155 = sphi 0, %s155
      %s157 = sphi 0, %s155
      %s158 = sphi 0, %s157
      %s172 = sphi 0, %s158
      %s178 = sphi 0, %s180
      %s181 = sphi 0, %s178
      %s182 = sphi 0, %s181
      %s198 = sphi 0, %s182
    $region4: #{model_forward.1} parent=1 // loop_header_branch
      %19 = sbr.rel (%p17) target = $region8
    $region5: #{model_forward.1} parent=1 // loop_body
      %s21 = ssub.s32 %s16, 1
      %s22 = ssub.s32 %s16, 2
      %s23 = sadd.s32 %s16, 1
      %s24 = ssub.s32 %s16, %s23
      %p25 = scmp.eq.s32.totalorder %s24, 0
      %s27 = sadd.s32 %s26, 1
      %s28 = scalar_select %p25, %s26, %s27
      %p31 = pneg %p25
      %p32 = scmp.eq.s32.totalorder %s16, 1
      %p33 = por %p31, %p32
      %p34 = scmp.ne.s32.totalorder %s26, %s29
      %p35 = scmp.eq.s32.totalorder %s16, 0
      %p36 = por %p34, %p35
      %p37 = scmp.ne.s32.totalorder %s26, %s29
      %p38 = scmp.eq.s32.totalorder %s21, 1
      %p39 = por %p37, %p38
      %p40 = scmp.ne.s32.totalorder %s29, %s30
      %p41 = scmp.eq.s32.totalorder %s21, 0
      %p42 = por %p40, %p41
      %p43 = scmp.ne.s32.totalorder %s29, %s30
      %p44 = scmp.eq.s32.totalorder %s22, 1
      %p45 = por %p43, %p44
      %p47 = scmp.ne.s32.totalorder %s30, %s46
      %p48 = scmp.eq.s32.totalorder %s22, 0
      %p49 = por %p47, %p48
      %s51 = sadd.s32 %s50, 1
      %p54 = scmp.eq.s32.totalorder %s16, 1
      %p55 = scmp.ne.s32.totalorder %s50, %s52
      %p56 = scmp.eq.s32.totalorder %s16, 0
      %p57 = por %p55, %p56
      %p58 = scmp.ne.s32.totalorder %s50, %s52
      %p59 = scmp.eq.s32.totalorder %s21, 1
      %p60 = por %p58, %p59
      %p61 = scmp.ne.s32.totalorder %s52, %s53
      %p62 = scmp.eq.s32.totalorder %s21, 0
      %p63 = por %p61, %p62
      %p64 = scmp.ne.s32.totalorder %s52, %s53
      %p65 = scmp.eq.s32.totalorder %s22, 1
      %p66 = por %p64, %p65
      %p68 = scmp.ne.s32.totalorder %s53, %s67
      %p69 = scmp.eq.s32.totalorder %s22, 0
      %p70 = por %p68, %p69
      %s72 = sadd.s32 %s71, 1
      %p75 = scmp.eq.s32.totalorder %s16, 1
      %p76 = scmp.ne.s32.totalorder %s71, %s73
      %p77 = scmp.eq.s32.totalorder %s16, 0
      %p78 = por %p76, %p77
      %p79 = scmp.ne.s32.totalorder %s71, %s73
      %p80 = scmp.eq.s32.totalorder %s21, 1
      %p81 = por %p79, %p80
      %p82 = scmp.ne.s32.totalorder %s73, %s74
      %p83 = scmp.eq.s32.totalorder %s21, 0
      %p84 = por %p82, %p83
      %p85 = scmp.ne.s32.totalorder %s73, %s74
      %p86 = scmp.eq.s32.totalorder %s22, 1
      %p87 = por %p85, %p86
      %p89 = scmp.ne.s32.totalorder %s74, %s88
      %p90 = scmp.eq.s32.totalorder %s22, 0
      %p91 = por %p89, %p90
      %s93 = sadd.s32 %s92, 1
      %p96 = scmp.eq.s32.totalorder %s16, 1
      %p97 = scmp.ne.s32.totalorder %s92, %s94
      %p98 = scmp.eq.s32.totalorder %s16, 0
      %p99 = por %p97, %p98
      %p100 = scmp.ne.s32.totalorder %s92, %s94
      %p101 = scmp.eq.s32.totalorder %s21, 1
      %p102 = por %p100, %p101
      %p103 = scmp.ne.s32.totalorder %s94, %s95
      %p104 = scmp.eq.s32.totalorder %s21, 0
      %p105 = por %p103, %p104
      %p106 = scmp.ne.s32.totalorder %s94, %s95
      %p107 = scmp.eq.s32.totalorder %s22, 1
      %p108 = por %p106, %p107
      %p110 = scmp.ne.s32.totalorder %s95, %s109
      %p111 = scmp.eq.s32.totalorder %s22, 0
      %p112 = por %p110, %p111
      %s114 = sadd.s32 %s113, 1
      %p117 = scmp.eq.s32.totalorder %s16, 1
      %p118 = scmp.ne.s32.totalorder %s113, %s115
      %p119 = scmp.eq.s32.totalorder %s16, 0
      %p120 = por %p118, %p119
      %p121 = scmp.ne.s32.totalorder %s113, %s115
      %p122 = scmp.eq.s32.totalorder %s21, 1
      %p123 = por %p121, %p122
      %p124 = scmp.ne.s32.totalorder %s115, %s116
      %p125 = scmp.eq.s32.totalorder %s21, 0
      %p126 = por %p124, %p125
      %p127 = scmp.ne.s32.totalorder %s115, %s116
      %p128 = scmp.eq.s32.totalorder %s22, 1
      %p129 = por %p127, %p128
      %p131 = scmp.ne.s32.totalorder %s116, %s130
      %p132 = scmp.eq.s32.totalorder %s22, 0
      %p133 = por %p131, %p132
      %s135 = sadd.s32 %s134, 1
      %p138 = scmp.eq.s32.totalorder %s16, 1
      %p139 = scmp.ne.s32.totalorder %s134, %s136
      %p140 = scmp.eq.s32.totalorder %s16, 0
      %p141 = por %p139, %p140
      %p142 = scmp.ne.s32.totalorder %s134, %s136
      %p143 = scmp.eq.s32.totalorder %s21, 1
      %p144 = por %p142, %p143
      %p145 = scmp.ne.s32.totalorder %s136, %s137
      %p146 = scmp.eq.s32.totalorder %s21, 0
      %p147 = por %p145, %p146
      %p148 = scmp.ne.s32.totalorder %s136, %s137
      %p149 = scmp.eq.s32.totalorder %s22, 1
      %p150 = por %p148, %p149
      %p152 = scmp.ne.s32.totalorder %s137, %s151
      %p153 = scmp.eq.s32.totalorder %s22, 0
      %p154 = por %p152, %p153
      %s156 = sadd.s32 %s155, 1
      %p159 = scmp.eq.s32.totalorder %s16, 1
      %p160 = scmp.ne.s32.totalorder %s155, %s157
      %p161 = scmp.eq.s32.totalorder %s16, 0
      %p162 = por %p160, %p161
      %p163 = scmp.ne.s32.totalorder %s155, %s157
      %p164 = scmp.eq.s32.totalorder %s21, 1
      %p165 = por %p163, %p164
      %p166 = scmp.ne.s32.totalorder %s157, %s158
      %p167 = scmp.eq.s32.totalorder %s21, 0
      %p168 = por %p166, %p167
      %p169 = scmp.ne.s32.totalorder %s157, %s158
      %p170 = scmp.eq.s32.totalorder %s22, 1
      %p171 = por %p169, %p170
      %p173 = scmp.ne.s32.totalorder %s158, %s172
      %p174 = scmp.eq.s32.totalorder %s22, 0
      %p175 = por %p173, %p174
      %s176 = ssub.s32 %s16, %s23
      %p177 = scmp.eq.s32.totalorder %s176, 0
      %s179 = sadd.s32 %s178, 1
      %s180 = scalar_select %p177, %s178, %s179
      %p183 = pneg %p177
      %p184 = scmp.eq.s32.totalorder %s16, 1
      %p185 = por %p183, %p184
      %p186 = scmp.ne.s32.totalorder %s178, %s181
      %p187 = scmp.eq.s32.totalorder %s16, 0
      %p188 = por %p186, %p187
      %p189 = scmp.ne.s32.totalorder %s178, %s181
      %p190 = scmp.eq.s32.totalorder %s21, 1
      %p191 = por %p189, %p190
      %p192 = scmp.ne.s32.totalorder %s181, %s182
      %p193 = scmp.eq.s32.totalorder %s21, 0
      %p194 = por %p192, %p193
      %p195 = scmp.ne.s32.totalorder %s181, %s182
      %p196 = scmp.eq.s32.totalorder %s22, 1
      %p197 = por %p195, %p196
      %p199 = scmp.ne.s32.totalorder %s182, %s198
      %p200 = scmp.eq.s32.totalorder %s22, 0
      %p201 = por %p199, %p200
      %p202 = scmp.le.s32.totalorder 1, %s16
      %p203 = scmp.lt.s32.totalorder %s16, 3
      %p204 = pnand %p202, %p203
      %p205 = pneg %p204
      // Predicated region
      $region9: #{model_forward.1} parent=5 // pred_check
        _
      $region10: #{model_forward.1} parent=5 // pred_check_branch
        %207 = sbr.rel (%p204) target = $region12
      $region11: #{model_forward.1} parent=5 // pred_region
        %s208 = ssub.s32 %s16, 1
        // Predicated region
        $region13: #{model_forward.1} parent=11 // pred_check
          %p209 = pneg %p63
        $region14: #{model_forward.1} parent=11 // pred_check_branch
          %211 = sbr.rel (%p209) target = $region16
        $region15: #{model_forward.1} parent=11 // pred_region
          _
        $region16: #{model_forward.1} parent=11 // pred_fallthru
          _
        // Predicated region
        $region17: #{model_forward.1} parent=11 // pred_check
          %p212 = pneg %p84
        $region18: #{model_forward.1} parent=11 // pred_check_branch
          %214 = sbr.rel (%p212) target = $region20
        $region19: #{model_forward.1} parent=11 // pred_region
          _
        $region20: #{model_forward.1} parent=11 // pred_fallthru
          _
        // Predicated region
        $region21: #{model_forward.1} parent=11 // pred_check
          %p215 = pneg %p105
        $region22: #{model_forward.1} parent=11 // pred_check_branch
          %217 = sbr.rel (%p215) target = $region24
        $region23: #{model_forward.1} parent=11 // pred_region
          _
        $region24: #{model_forward.1} parent=11 // pred_fallthru
          _
        // Predicated region
        $region25: #{model_forward.1} parent=11 // pred_check
          %p218 = pneg %p126
        $region26: #{model_forward.1} parent=11 // pred_check_branch
          %220 = sbr.rel (%p218) target = $region28
        $region27: #{model_forward.1} parent=11 // pred_region
          _
        $region28: #{model_forward.1} parent=11 // pred_fallthru
          _
        // Predicated region
        $region29: #{model_forward.1} parent=11 // pred_check
          %p221 = pneg %p147
        $region30: #{model_forward.1} parent=11 // pred_check_branch
          %223 = sbr.rel (%p221) target = $region32
        $region31: #{model_forward.1} parent=11 // pred_region
          _
        $region32: #{model_forward.1} parent=11 // pred_fallthru
          _
        // Predicated region
        $region33: #{model_forward.1} parent=11 // pred_check
          %p224 = pneg %p168
        $region34: #{model_forward.1} parent=11 // pred_check_branch
          %226 = sbr.rel (%p224) target = $region36
        $region35: #{model_forward.1} parent=11 // pred_region
          _
        $region36: #{model_forward.1} parent=11 // pred_fallthru
          _
      $region12: #{model_forward.1} parent=5 // pred_fallthru
        _
      %p227 = scmp.lt.s32.totalorder %s16, 2
      // Predicated region
      $region37: #{model_forward.1} parent=5 // pred_check
        %p228 = pneg %p227
      $region38: #{model_forward.1} parent=5 // pred_check_branch
        %230 = sbr.rel (%p228) target = $region40
      $region39: #{model_forward.1} parent=5 // pred_region
        // Predicated region
        $region41: #{model_forward.1} parent=39 // pred_check
          %p231 = pneg %p36
        $region42: #{model_forward.1} parent=39 // pred_check_branch
          %233 = sbr.rel (%p231) target = $region44
        $region43: #{model_forward.1} parent=39 // pred_region
          %p234 = scmp.lt.s32.totalorder %s16, 1
          %s235 = scalar_select %p234, %s16, 1
          %s236 = smul.addr %s235, 2
          %s237 = smul.addr %s236, 4
          %s238 = scalar_lea.vmem %s0, %s237
        $region44: #{model_forward.1} parent=39 // pred_fallthru
          _
      $region40: #{model_forward.1} parent=5 // pred_fallthru
        _
      %p239 = scmp.le.s32.totalorder 1, %s16
      %p240 = scmp.lt.s32.totalorder %s16, 3
      %p241 = pnand %p239, %p240
      %p242 = pneg %p241
      // Predicated region
      $region45: #{model_forward.1} parent=5 // pred_check
        _
      $region46: #{model_forward.1} parent=5 // pred_check_branch
        %244 = sbr.rel (%p241) target = $region48
      $region47: #{model_forward.1} parent=5 // pred_region
        %s245 = ssub.s32 %s16, 1
        %p246 = scmp.lt.s32.totalorder %s21, 1
        %s247 = scalar_select %p246, %s21, 1
        %s248 = smul.addr %s247, 2
        %s249 = smul.addr %s248, 4
        %s250 = scalar_lea.vmem %s0, %s249
        %p251 = pneg %p42
        %p252 = pneg %p39
        %p253 = pneg %p63
        %p254 = pneg %p60
        %p255 = pneg %p84
        %p256 = pneg %p81
        %p257 = pneg %p105
        %p258 = pneg %p102
        %p259 = pneg %p126
        %p260 = pneg %p123
        %p261 = pneg %p147
        %p262 = pneg %p144
        %p263 = pneg %p168
        %p264 = pneg %p165
        %p265 = pneg %p194
        %p266 = pneg %p191
        %s267 = sand.u32 %s181, 1
        %s268 = scalar_lea.sflag [#allocation3], %s267
        %s269 = sand.u32 %s181, 1
        %s270 = scalar_lea.vmem [#allocation2], %s269
        %p271 = scmp.lt.s32.totalorder %s21, 1
        %s272 = scalar_select %p271, %s21, 1
        %s273 = smul.addr %s272, 2
        %s274 = smul.addr %s273, 4
        %s275 = scalar_lea.vmem %s0, %s274
        %v277 = vld [vmem:[%s275] sm:$0xf]
        %v278 = vld [vmem:[%s275 + $0x4] sm:$0xf]
        %v279 = vunpack.c.l.bf16 %v277
        %v280 = vunpack.c.l.bf16 %v278
        %v281 = vld [vmem:[%s1] sm:$0xf]
        %v282 = vld [vmem:[%s1 + $0x4] sm:$0xf]
        %v283 = vld [vmem:[%s1 + $0x8] sm:$0xf]
        %v284 = vld [vmem:[%s1 + $0xc] sm:$0xf]
        %v285 = vld [vmem:[%s1 + $0x10] sm:$0xf]
        %v286 = vld [vmem:[%s1 + $0x14] sm:$0xf]
        %v287 = vld [vmem:[%s1 + $0x18] sm:$0xf]
        %v288 = vld [vmem:[%s1 + $0x1c] sm:$0xf]
        %v289 = vld [vmem:[%s1 + $0x20] sm:$0xf]
        %v290 = vld [vmem:[%s1 + $0x24] sm:$0xf]
        %v291 = vld [vmem:[%s1 + $0x28] sm:$0xf]
        %v292 = vld [vmem:[%s1 + $0x2c] sm:$0xf]
        %v293 = vld [vmem:[%s1 + $0x30] sm:$0xf]
        %v294 = vld [vmem:[%s1 + $0x34] sm:$0xf]
        %v295 = vld [vmem:[%s1 + $0x38] sm:$0xf]
        %v296 = vld [vmem:[%s1 + $0x3c] sm:$0xf]
        %v297 = vld [vmem:[%s1 + $0x40] sm:$0xf]
        %v298 = vld [vmem:[%s1 + $0x44] sm:$0xf]
        %v299 = vld [vmem:[%s1 + $0x48] sm:$0xf]
        %v300 = vld [vmem:[%s1 + $0x4c] sm:$0xf]
        %v301 = vld [vmem:[%s1 + $0x50] sm:$0xf]
        %v302 = vld [vmem:[%s1 + $0x54] sm:$0xf]
        %v303 = vld [vmem:[%s1 + $0x58] sm:$0xf]
        %v304 = vld [vmem:[%s1 + $0x5c] sm:$0xf]
        %v305 = vld [vmem:[%s1 + $0x60] sm:$0xf]
        %v306 = vld [vmem:[%s1 + $0x64] sm:$0xf]
        %v307 = vld [vmem:[%s1 + $0x68] sm:$0xf]
        %v308 = vld [vmem:[%s1 + $0x6c] sm:$0xf]
        %v309 = vld [vmem:[%s1 + $0x70] sm:$0xf]
        %v310 = vld [vmem:[%s1 + $0x74] sm:$0xf]
        %v311 = vld [vmem:[%s1 + $0x78] sm:$0xf]
        %v312 = vld [vmem:[%s1 + $0x7c] sm:$0xf]
        %v313 = vld [vmem:[%s1 + $0x80] sm:$0xf]
        %v314 = vld [vmem:[%s1 + $0x84] sm:$0xf]
        %v315 = vld [vmem:[%s1 + $0x88] sm:$0xf]
        %v316 = vld [vmem:[%s1 + $0x8c] sm:$0xf]
        %v317 = vld [vmem:[%s1 + $0x90] sm:$0xf]
        %v318 = vld [vmem:[%s1 + $0x94] sm:$0xf]
        %v319 = vld [vmem:[%s1 + $0x98] sm:$0xf]
        %v320 = vld [vmem:[%s1 + $0x9c] sm:$0xf]
        %v321 = vld [vmem:[%s1 + $0xa0] sm:$0xf]
        %v322 = vld [vmem:[%s1 + $0xa4] sm:$0xf]
        %v323 = vld [vmem:[%s1 + $0xa8] sm:$0xf]
        %v324 = vld [vmem:[%s1 + $0xac] sm:$0xf]
        %v325 = vld [vmem:[%s1 + $0xb0] sm:$0xf]
        %v326 = vld [vmem:[%s1 + $0xb4] sm:$0xf]
        %v327 = vld [vmem:[%s1 + $0xb8] sm:$0xf]
        %v328 = vld [vmem:[%s1 + $0xbc] sm:$0xf]
        %v329 = vld [vmem:[%s2] sm:$0x1]
        %v330 = vld [vmem:[%s3] sm:$0xf]
        %v331 = vld [vmem:[%s3 + $0x4] sm:$0xf]
        %v332 = vld [vmem:[%s3 + $0x8] sm:$0xf]
        %v333 = vld [vmem:[%s3 + $0xc] sm:$0xf]
        %v334 = vld [vmem:[%s3 + $0x10] sm:$0xf]
        %v335 = vld [vmem:[%s3 + $0x14] sm:$0xf]
        %v336 = vld [vmem:[%s3 + $0x18] sm:$0xf]
        %v337 = vld [vmem:[%s3 + $0x1c] sm:$0xf]
        %v338 = vld [vmem:[%s3 + $0x20] sm:$0xf]
        %v339 = vld [vmem:[%s3 + $0x24] sm:$0xf]
        %v340 = vld [vmem:[%s3 + $0x28] sm:$0xf]
        %v341 = vld [vmem:[%s3 + $0x2c] sm:$0xf]
        %v342 = vld [vmem:[%s3 + $0x30] sm:$0xf]
        %v343 = vld [vmem:[%s3 + $0x34] sm:$0xf]
        %v344 = vld [vmem:[%s3 + $0x38] sm:$0xf]
        %v345 = vld [vmem:[%s3 + $0x3c] sm:$0xf]
        %v346 = vld [vmem:[%s3 + $0x40] sm:$0xf]
        %v347 = vld [vmem:[%s3 + $0x44] sm:$0xf]
        %v348 = vld [vmem:[%s3 + $0x48] sm:$0xf]
        %v349 = vld [vmem:[%s3 + $0x4c] sm:$0xf]
        %v350 = vld [vmem:[%s3 + $0x50] sm:$0xf]
        %v351 = vld [vmem:[%s3 + $0x54] sm:$0xf]
        %v352 = vld [vmem:[%s3 + $0x58] sm:$0xf]
        %v353 = vld [vmem:[%s3 + $0x5c] sm:$0xf]
        %v354 = vld [vmem:[%s3 + $0x60] sm:$0xf]
        %v355 = vld [vmem:[%s3 + $0x64] sm:$0xf]
        %v356 = vld [vmem:[%s3 + $0x68] sm:$0xf]
        %v357 = vld [vmem:[%s3 + $0x6c] sm:$0xf]
        %v358 = vld [vmem:[%s3 + $0x70] sm:$0xf]
        %v359 = vld [vmem:[%s3 + $0x74] sm:$0xf]
        %v360 = vld [vmem:[%s3 + $0x78] sm:$0xf]
        %v361 = vld [vmem:[%s3 + $0x7c] sm:$0xf]
        %v362 = vld [vmem:[%s3 + $0x80] sm:$0xf]
        %v363 = vld [vmem:[%s3 + $0x84] sm:$0xf]
        %v364 = vld [vmem:[%s3 + $0x88] sm:$0xf]
        %v365 = vld [vmem:[%s3 + $0x8c] sm:$0xf]
        %v366 = vld [vmem:[%s3 + $0x90] sm:$0xf]
        %v367 = vld [vmem:[%s3 + $0x94] sm:$0xf]
        %v368 = vld [vmem:[%s3 + $0x98] sm:$0xf]
        %v369 = vld [vmem:[%s3 + $0x9c] sm:$0xf]
        %v370 = vld [vmem:[%s3 + $0xa0] sm:$0xf]
        %v371 = vld [vmem:[%s3 + $0xa4] sm:$0xf]
        %v372 = vld [vmem:[%s3 + $0xa8] sm:$0xf]
        %v373 = vld [vmem:[%s3 + $0xac] sm:$0xf]
        %v374 = vld [vmem:[%s3 + $0xb0] sm:$0xf]
        %v375 = vld [vmem:[%s3 + $0xb4] sm:$0xf]
        %v376 = vld [vmem:[%s3 + $0xb8] sm:$0xf]
        %v377 = vld [vmem:[%s3 + $0xbc] sm:$0xf]
        %v378 = vld [vmem:[%s4] sm:$0x1]
        %vm382 = vcmask 1046528
        %v383 = vrot.slane %v279, 1
        %v384 = vrot.slane %v280, 1
        %v385 = vsel %vm382, %v383, %v384
        %v386 = vrot.slane 0.0, 1
        %v387 = vsel %vm382, %v384, %v386
        %vm390 = vcmask 1045504
        %v391 = vrot.slane %v279, 2
        %v392 = vrot.slane %v280, 2
        %v393 = vsel %vm390, %v391, %v392
        %v394 = vrot.slane 0.0, 2
        %v395 = vsel %vm390, %v392, %v394
        %v398 = vpack.c.bf16 %v280, %v279
        %v399 = vpack.c.bf16 %v387, %v385
        %v400 = vpack.c.bf16 %v395, %v393
        %v402 = vlaneseq
        %v403 = vshrl.u32 %v402, 7
        %v404 = vsub.s32 0, %v403
        %v405 = vrot.slane %v329, %v404
        %v455 = vunpack.c.l.b16 %v281
        %v456 = vunpack.c.l.b16 %v282
        %v457 = vunpack.c.l.b16 %v283
        %v458 = vunpack.c.l.b16 %v284
        %v459 = vunpack.c.l.b16 %v285
        %v460 = vunpack.c.l.b16 %v286
        %v461 = vunpack.c.l.b16 %v287
        %v462 = vunpack.c.l.b16 %v288
        %v463 = vunpack.c.l.b16 %v289
        %v464 = vunpack.c.l.b16 %v290
        %v465 = vunpack.c.l.b16 %v291
        %v466 = vunpack.c.l.b16 %v292
        %v467 = vunpack.c.l.b16 %v293
        %v468 = vunpack.c.l.b16 %v294
        %v469 = vunpack.c.l.b16 %v295
        %v470 = vunpack.c.l.b16 %v296
        %v471 = vunpack.c.l.b16 %v297
        %v472 = vunpack.c.l.b16 %v298
        %v473 = vunpack.c.l.b16 %v299
        %v474 = vunpack.c.l.b16 %v300
        %v475 = vunpack.c.l.b16 %v301
        %v476 = vunpack.c.l.b16 %v302
        %v477 = vunpack.c.l.b16 %v303
        %v478 = vunpack.c.l.b16 %v304
        %v479 = vunpack.c.l.b16 %v305
        %v480 = vunpack.c.l.b16 %v306
        %v481 = vunpack.c.l.b16 %v307
        %v482 = vunpack.c.l.b16 %v308
        %v483 = vunpack.c.l.b16 %v309
        %v484 = vunpack.c.l.b16 %v310
        %v485 = vunpack.c.l.b16 %v311
        %v486 = vunpack.c.l.b16 %v312
        %v487 = vunpack.c.l.b16 %v313
        %v488 = vunpack.c.l.b16 %v314
        %v489 = vunpack.c.l.b16 %v315
        %v490 = vunpack.c.l.b16 %v316
        %v491 = vunpack.c.l.b16 %v317
        %v492 = vunpack.c.l.b16 %v318
        %v493 = vunpack.c.l.b16 %v319
        %v494 = vunpack.c.l.b16 %v320
        %v495 = vunpack.c.l.b16 %v321
        %v496 = vunpack.c.l.b16 %v322
        %v497 = vunpack.c.l.b16 %v323
        %v498 = vunpack.c.l.b16 %v324
        %v499 = vunpack.c.l.b16 %v325
        %v500 = vunpack.c.l.b16 %v326
        %v501 = vunpack.c.l.b16 %v327
        %v502 = vunpack.c.l.b16 %v328
        %v503 = vpack.c.b16 %v456, %v455
        %v504 = vpack.c.b16 %v458, %v457
        %v505 = vpack.c.b16 %v460, %v459
        %v506 = vpack.c.b16 %v462, %v461
        %v507 = vpack.c.b16 %v464, %v463
        %v508 = vpack.c.b16 %v466, %v465
        %v509 = vpack.c.b16 %v468, %v467
        %v510 = vpack.c.b16 %v470, %v469
        %v511 = vpack.c.b16 %v472, %v471
        %v512 = vpack.c.b16 %v474, %v473
        %v513 = vpack.c.b16 %v476, %v475
        %v514 = vpack.c.b16 %v478, %v477
        %v515 = vpack.c.b16 %v480, %v479
        %v516 = vpack.c.b16 %v482, %v481
        %v517 = vpack.c.b16 %v484, %v483
        %v518 = vpack.c.b16 %v486, %v485
        %v519 = vpack.c.b16 %v488, %v487
        %v520 = vpack.c.b16 %v490, %v489
        %v521 = vpack.c.b16 %v492, %v491
        %v522 = vpack.c.b16 %v494, %v493
        %v523 = vpack.c.b16 %v496, %v495
        %v524 = vpack.c.b16 %v498, %v497
        %v525 = vpack.c.b16 %v500, %v499
        %v526 = vpack.c.b16 %v502, %v501
        %551 = vmatprep.subr.bf16.mxu0 0
        %552 = vmatpush1.bf16.msra.mxu0 %v510
        %553 = vmatprep.subr.bf16.mxu0 0
        %554 = vmatpush1.bf16.msra.mxu0 %v509
        %555 = vmatprep.subr.bf16.mxu0 0
        %556 = vmatpush1.bf16.msra.mxu0 %v508
        %557 = vmatprep.subr.bf16.mxu0 0
        %558 = vmatpush1.bf16.msra.mxu0 %v507
        %559 = vmatprep.subr.bf16.mxu0 0
        %560 = vmatpush1.bf16.msra.mxu0 %v506
        %561 = vmatprep.subr.bf16.mxu0 0
        %562 = vmatpush1.bf16.msra.mxu0 %v505
        %563 = vmatprep.subr.bf16.mxu0 0
        %564 = vmatpush1.bf16.msra.mxu0 %v504
        %565 = vmatprep.subr.bf16.mxu0 0
        %566 = vmatpush1.bf16.msra.mxu0 %v503
        %567 = vmatprep.subr.bf16.mxu0 0
        %568 = vmatpush2.bf16.msra.mxu0 %v518
        %569 = vmatprep.subr.bf16.mxu0 0
        %570 = vmatpush2.bf16.msra.mxu0 %v517
        %571 = vmatprep.subr.bf16.mxu0 0
        %572 = vmatpush2.bf16.msra.mxu0 %v516
        %573 = vmatprep.subr.bf16.mxu0 0
        %574 = vmatpush2.bf16.msra.mxu0 %v515
        %575 = vmatprep.subr.bf16.mxu0 0
        %576 = vmatpush2.bf16.msra.mxu0 %v514
        %577 = vmatprep.subr.bf16.mxu0 0
        %578 = vmatpush2.bf16.msra.mxu0 %v513
        %579 = vmatprep.subr.bf16.mxu0 0
        %580 = vmatpush2.bf16.msra.mxu0 %v512
        %581 = vmatprep.subr.bf16.mxu0 0
        %582 = vmatpush2.bf16.msra.mxu0 %v511
        %583 = vmatprep.mubr.bf16.mxu0 %v399
        %584 = vmatmul.mubr.bf16.gmra.mxu0 %v398
        %v585 = vpop.f32.mrf.mxu0
        %v586 = vadd.f32 %v405, %v585
        %v587 = vpop.f32.mrf.mxu0
        %v588 = vpop.f32.mrf.mxu0
        %v589 = vadd.f32 %v405, %v588
        %v590 = vpop.f32.mrf.mxu0
        %591 = vdwg.mxu0
        %592 = vmatprep.subr.bf16.mxu0 0
        %593 = vmatpush1.bf16.msra.mxu0 %v526
        %594 = vmatprep.subr.bf16.mxu0 0
        %595 = vmatpush1.bf16.msra.mxu0 %v525
        %596 = vmatprep.subr.bf16.mxu0 0
        %597 = vmatpush1.bf16.msra.mxu0 %v524
        %598 = vmatprep.subr.bf16.mxu0 0
        %599 = vmatpush1.bf16.msra.mxu0 %v523
        %600 = vmatprep.subr.bf16.mxu0 0
        %601 = vmatpush1.bf16.msra.mxu0 %v522
        %602 = vmatprep.subr.bf16.mxu0 0
        %603 = vmatpush1.bf16.msra.mxu0 %v521
        %604 = vmatprep.subr.bf16.mxu0 0
        %605 = vmatpush1.bf16.msra.mxu0 %v520
        %606 = vmatprep.subr.bf16.mxu0 0
        %607 = vmatpush1.bf16.msra.mxu0 %v519
        %608 = vmatprep.subr.bf16.mxu0 0
        %609 = vmatpush2.bf16.msra.mxu0 0
        %610 = vmatprep.subr.bf16.mxu0 0
        %611 = vmatpush2.bf16.msra.mxu0 0
        %612 = vmatprep.subr.bf16.mxu0 0
        %613 = vmatpush2.bf16.msra.mxu0 0
        %614 = vmatprep.subr.bf16.mxu0 0
        %615 = vmatpush2.bf16.msra.mxu0 0
        %616 = vmatprep.subr.bf16.mxu0 0
        %617 = vmatpush2.bf16.msra.mxu0 0
        %618 = vmatprep.subr.bf16.mxu0 0
        %619 = vmatpush2.bf16.msra.mxu0 0
        %620 = vmatprep.subr.bf16.mxu0 0
        %621 = vmatpush2.bf16.msra.mxu0 0
        %622 = vmatprep.subr.bf16.mxu0 0
        %623 = vmatpush2.bf16.msra.mxu0 0
        %624 = vmatprep.mubr.bf16.mxu0 0
        %625 = vmatmul.mubr.bf16.gmra.mxu0 %v400
        %v626 = vpop.f32.mrf.mxu0
        %v627 = vadd.f32 %v586, %v626
        %v628 = vpop.f32.mrf.mxu0
        %v629 = vpop.f32.mrf.mxu0
        %v630 = vadd.f32 %v589, %v629
        %v631 = vpop.f32.mrf.mxu0
        %632 = vdwg.mxu0
        %v633 = vmax.f32 %v627, 0.0
        %v634 = vmax.f32 %v630, 0.0
        %vm637 = vcmask 1040384
        %v638 = vrot.slane %v633, 7
        %v639 = vrot.slane %v634, 7
        %v640 = vsel %vm637, %v638, %v639
        %v643 = vsel %vm637, 0.0, %v638
        %v644 = vsel %vm382, %v640, 0.0
        %v647 = vrot.slane %v643, 1
        %v648 = vrot.slane %v644, 1
        %v649 = vsel %vm382, %v647, %v648
        %v650 = vsel %vm382, %v648, %v386
        %v653 = vrot.slane %v643, 2
        %v654 = vrot.slane %v644, 2
        %v655 = vsel %vm390, %v653, %v654
        %v656 = vsel %vm390, %v654, %v394
        %v659 = vpack.c.bf16 %v644, %v643
        %v660 = vpack.c.bf16 %v650, %v649
        %v661 = vpack.c.bf16 %v656, %v655
        %v663 = vlaneseq
        %v664 = vshrl.u32 %v663, 7
        %v665 = vsub.s32 0, %v664
        %v666 = vrot.slane %v378, %v665
        %v716 = vunpack.c.l.b16 %v330
        %v717 = vunpack.c.l.b16 %v331
        %v718 = vunpack.c.l.b16 %v332
        %v719 = vunpack.c.l.b16 %v333
        %v720 = vunpack.c.l.b16 %v334
        %v721 = vunpack.c.l.b16 %v335
        %v722 = vunpack.c.l.b16 %v336
        %v723 = vunpack.c.l.b16 %v337
        %v724 = vunpack.c.l.b16 %v338
        %v725 = vunpack.c.l.b16 %v339
        %v726 = vunpack.c.l.b16 %v340
        %v727 = vunpack.c.l.b16 %v341
        %v728 = vunpack.c.l.b16 %v342
        %v729 = vunpack.c.l.b16 %v343
        %v730 = vunpack.c.l.b16 %v344
        %v731 = vunpack.c.l.b16 %v345
        %v732 = vunpack.c.l.b16 %v346
        %v733 = vunpack.c.l.b16 %v347
        %v734 = vunpack.c.l.b16 %v348
        %v735 = vunpack.c.l.b16 %v349
        %v736 = vunpack.c.l.b16 %v350
        %v737 = vunpack.c.l.b16 %v351
        %v738 = vunpack.c.l.b16 %v352
        %v739 = vunpack.c.l.b16 %v353
        %v740 = vunpack.c.l.b16 %v354
        %v741 = vunpack.c.l.b16 %v355
        %v742 = vunpack.c.l.b16 %v356
        %v743 = vunpack.c.l.b16 %v357
        %v744 = vunpack.c.l.b16 %v358
        %v745 = vunpack.c.l.b16 %v359
        %v746 = vunpack.c.l.b16 %v360
        %v747 = vunpack.c.l.b16 %v361
        %v748 = vunpack.c.l.b16 %v362
        %v749 = vunpack.c.l.b16 %v363
        %v750 = vunpack.c.l.b16 %v364
        %v751 = vunpack.c.l.b16 %v365
        %v752 = vunpack.c.l.b16 %v366
        %v753 = vunpack.c.l.b16 %v367
        %v754 = vunpack.c.l.b16 %v368
        %v755 = vunpack.c.l.b16 %v369
        %v756 = vunpack.c.l.b16 %v370
        %v757 = vunpack.c.l.b16 %v371
        %v758 = vunpack.c.l.b16 %v372
        %v759 = vunpack.c.l.b16 %v373
        %v760 = vunpack.c.l.b16 %v374
        %v761 = vunpack.c.l.b16 %v375
        %v762 = vunpack.c.l.b16 %v376
        %v763 = vunpack.c.l.b16 %v377
        %v764 = vpack.c.b16 %v717, %v716
        %v765 = vpack.c.b16 %v719, %v718
        %v766 = vpack.c.b16 %v721, %v720
        %v767 = vpack.c.b16 %v723, %v722
        %v768 = vpack.c.b16 %v725, %v724
        %v769 = vpack.c.b16 %v727, %v726
        %v770 = vpack.c.b16 %v729, %v728
        %v771 = vpack.c.b16 %v731, %v730
        %v772 = vpack.c.b16 %v733, %v732
        %v773 = vpack.c.b16 %v735, %v734
        %v774 = vpack.c.b16 %v737, %v736
        %v775 = vpack.c.b16 %v739, %v738
        %v776 = vpack.c.b16 %v741, %v740
        %v777 = vpack.c.b16 %v743, %v742
        %v778 = vpack.c.b16 %v745, %v744
        %v779 = vpack.c.b16 %v747, %v746
        %v780 = vpack.c.b16 %v749, %v748
        %v781 = vpack.c.b16 %v751, %v750
        %v782 = vpack.c.b16 %v753, %v752
        %v783 = vpack.c.b16 %v755, %v754
        %v784 = vpack.c.b16 %v757, %v756
        %v785 = vpack.c.b16 %v759, %v758
        %v786 = vpack.c.b16 %v761, %v760
        %v787 = vpack.c.b16 %v763, %v762
        %812 = vmatprep.subr.bf16.mxu0 0
        %813 = vmatpush1.bf16.msra.mxu0 %v771
        %814 = vmatprep.subr.bf16.mxu0 0
        %815 = vmatpush1.bf16.msra.mxu0 %v770
        %816 = vmatprep.subr.bf16.mxu0 0
        %817 = vmatpush1.bf16.msra.mxu0 %v769
        %818 = vmatprep.subr.bf16.mxu0 0
        %819 = vmatpush1.bf16.msra.mxu0 %v768
        %820 = vmatprep.subr.bf16.mxu0 0
        %821 = vmatpush1.bf16.msra.mxu0 %v767
        %822 = vmatprep.subr.bf16.mxu0 0
        %823 = vmatpush1.bf16.msra.mxu0 %v766
        %824 = vmatprep.subr.bf16.mxu0 0
        %825 = vmatpush1.bf16.msra.mxu0 %v765
        %826 = vmatprep.subr.bf16.mxu0 0
        %827 = vmatpush1.bf16.msra.mxu0 %v764
        %828 = vmatprep.subr.bf16.mxu0 0
        %829 = vmatpush2.bf16.msra.mxu0 %v779
        %830 = vmatprep.subr.bf16.mxu0 0
        %831 = vmatpush2.bf16.msra.mxu0 %v778
        %832 = vmatprep.subr.bf16.mxu0 0
        %833 = vmatpush2.bf16.msra.mxu0 %v777
        %834 = vmatprep.subr.bf16.mxu0 0
        %835 = vmatpush2.bf16.msra.mxu0 %v776
        %836 = vmatprep.subr.bf16.mxu0 0
        %837 = vmatpush2.bf16.msra.mxu0 %v775
        %838 = vmatprep.subr.bf16.mxu0 0
        %839 = vmatpush2.bf16.msra.mxu0 %v774
        %840 = vmatprep.subr.bf16.mxu0 0
        %841 = vmatpush2.bf16.msra.mxu0 %v773
        %842 = vmatprep.subr.bf16.mxu0 0
        %843 = vmatpush2.bf16.msra.mxu0 %v772
        %844 = vmatprep.mubr.bf16.mxu0 %v660
        %845 = vmatmul.mubr.bf16.gmra.mxu0 %v659
        %v846 = vpop.f32.mrf.mxu0
        %v847 = vadd.f32 %v666, %v846
        %v848 = vpop.f32.mrf.mxu0
        %v849 = vpop.f32.mrf.mxu0
        %v850 = vadd.f32 %v666, %v849
        %v851 = vpop.f32.mrf.mxu0
        %852 = vdwg.mxu0
        %853 = vmatprep.subr.bf16.mxu0 0
        %854 = vmatpush1.bf16.msra.mxu0 %v787
        %855 = vmatprep.subr.bf16.mxu0 0
        %856 = vmatpush1.bf16.msra.mxu0 %v786
        %857 = vmatprep.subr.bf16.mxu0 0
        %858 = vmatpush1.bf16.msra.mxu0 %v785
        %859 = vmatprep.subr.bf16.mxu0 0
        %860 = vmatpush1.bf16.msra.mxu0 %v784
        %861 = vmatprep.subr.bf16.mxu0 0
        %862 = vmatpush1.bf16.msra.mxu0 %v783
        %863 = vmatprep.subr.bf16.mxu0 0
        %864 = vmatpush1.bf16.msra.mxu0 %v782
        %865 = vmatprep.subr.bf16.mxu0 0
        %866 = vmatpush1.bf16.msra.mxu0 %v781
        %867 = vmatprep.subr.bf16.mxu0 0
        %868 = vmatpush1.bf16.msra.mxu0 %v780
        %869 = vmatprep.subr.bf16.mxu0 0
        %870 = vmatpush2.bf16.msra.mxu0 0
        %871 = vmatprep.subr.bf16.mxu0 0
        %872 = vmatpush2.bf16.msra.mxu0 0
        %873 = vmatprep.subr.bf16.mxu0 0
        %874 = vmatpush2.bf16.msra.mxu0 0
        %875 = vmatprep.subr.bf16.mxu0 0
        %876 = vmatpush2.bf16.msra.mxu0 0
        %877 = vmatprep.subr.bf16.mxu0 0
        %878 = vmatpush2.bf16.msra.mxu0 0
        %879 = vmatprep.subr.bf16.mxu0 0
        %880 = vmatpush2.bf16.msra.mxu0 0
        %881 = vmatprep.subr.bf16.mxu0 0
        %882 = vmatpush2.bf16.msra.mxu0 0
        %883 = vmatprep.subr.bf16.mxu0 0
        %884 = vmatpush2.bf16.msra.mxu0 0
        %885 = vmatprep.mubr.bf16.mxu0 0
        %886 = vmatmul.mubr.bf16.gmra.mxu0 %v661
        %v887 = vpop.f32.mrf.mxu0
        %v888 = vadd.f32 %v847, %v887
        %v889 = vpop.f32.mrf.mxu0
        %v890 = vpop.f32.mrf.mxu0
        %v891 = vadd.f32 %v850, %v890
        %v892 = vpop.f32.mrf.mxu0
        %893 = vdwg.mxu0
        %v894 = vmax.f32 %v888, 0.0
        %v895 = vmax.f32 %v891, 0.0
        %v898 = vrot.slane %v894, 7
        %v899 = vrot.slane %v895, 7
        %v900 = vsel %vm637, %v898, %v899
        %v903 = vsel %vm637, 0.0, %v898
        %v904 = vsel %vm382, %v900, 0.0
        %v907 = vrot.slane %v903, 1
        %v908 = vrot.slane %v904, 1
        %v909 = vsel %vm382, %v907, %v908
        %v910 = vsel %vm382, %v908, %v386
        %v913 = vrot.slane %v903, 2
        %v914 = vrot.slane %v904, 2
        %v915 = vsel %vm390, %v913, %v914
        %v916 = vsel %vm390, %v914, %v394
        %v919 = vpack.c.bf16 %v904, %v903
        %v920 = vpack.c.bf16 %v910, %v909
        %v921 = vpack.c.bf16 %v916, %v915
        %922 = vmatprep.subr.bf16.mxu0 0
        %923 = vmatpush1.bf16.msra.mxu0 %v771
        %924 = vmatprep.subr.bf16.mxu0 0
        %925 = vmatpush1.bf16.msra.mxu0 %v770
        %926 = vmatprep.subr.bf16.mxu0 0
        %927 = vmatpush1.bf16.msra.mxu0 %v769
        %928 = vmatprep.subr.bf16.mxu0 0
        %929 = vmatpush1.bf16.msra.mxu0 %v768
        %930 = vmatprep.subr.bf16.mxu0 0
        %931 = vmatpush1.bf16.msra.mxu0 %v767
        %932 = vmatprep.subr.bf16.mxu0 0
        %933 = vmatpush1.bf16.msra.mxu0 %v766
        %934 = vmatprep.subr.bf16.mxu0 0
        %935 = vmatpush1.bf16.msra.mxu0 %v765
        %936 = vmatprep.subr.bf16.mxu0 0
        %937 = vmatpush1.bf16.msra.mxu0 %v764
        %938 = vmatprep.subr.bf16.mxu0 0
        %939 = vmatpush2.bf16.msra.mxu0 %v779
        %940 = vmatprep.subr.bf16.mxu0 0
        %941 = vmatpush2.bf16.msra.mxu0 %v778
        %942 = vmatprep.subr.bf16.mxu0 0
        %943 = vmatpush2.bf16.msra.mxu0 %v777
        %944 = vmatprep.subr.bf16.mxu0 0
        %945 = vmatpush2.bf16.msra.mxu0 %v776
        %946 = vmatprep.subr.bf16.mxu0 0
        %947 = vmatpush2.bf16.msra.mxu0 %v775
        %948 = vmatprep.subr.bf16.mxu0 0
        %949 = vmatpush2.bf16.msra.mxu0 %v774
        %950 = vmatprep.subr.bf16.mxu0 0
        %951 = vmatpush2.bf16.msra.mxu0 %v773
        %952 = vmatprep.subr.bf16.mxu0 0
        %953 = vmatpush2.bf16.msra.mxu0 %v772
        %954 = vmatprep.mubr.bf16.mxu0 %v920
        %955 = vmatmul.mubr.bf16.gmra.mxu0 %v919
        %v956 = vpop.f32.mrf.mxu0
        %v957 = vadd.f32 %v666, %v956
        %v958 = vpop.f32.mrf.mxu0
        %v959 = vpop.f32.mrf.mxu0
        %v960 = vadd.f32 %v666, %v959
        %v961 = vpop.f32.mrf.mxu0
        %962 = vdwg.mxu0
        %963 = vmatprep.subr.bf16.mxu0 0
        %964 = vmatpush1.bf16.msra.mxu0 %v787
        %965 = vmatprep.subr.bf16.mxu0 0
        %966 = vmatpush1.bf16.msra.mxu0 %v786
        %967 = vmatprep.subr.bf16.mxu0 0
        %968 = vmatpush1.bf16.msra.mxu0 %v785
        %969 = vmatprep.subr.bf16.mxu0 0
        %970 = vmatpush1.bf16.msra.mxu0 %v784
        %971 = vmatprep.subr.bf16.mxu0 0
        %972 = vmatpush1.bf16.msra.mxu0 %v783
        %973 = vmatprep.subr.bf16.mxu0 0
        %974 = vmatpush1.bf16.msra.mxu0 %v782
        %975 = vmatprep.subr.bf16.mxu0 0
        %976 = vmatpush1.bf16.msra.mxu0 %v781
        %977 = vmatprep.subr.bf16.mxu0 0
        %978 = vmatpush1.bf16.msra.mxu0 %v780
        %979 = vmatprep.subr.bf16.mxu0 0
        %980 = vmatpush2.bf16.msra.mxu0 0
        %981 = vmatprep.subr.bf16.mxu0 0
        %982 = vmatpush2.bf16.msra.mxu0 0
        %983 = vmatprep.subr.bf16.mxu0 0
        %984 = vmatpush2.bf16.msra.mxu0 0
        %985 = vmatprep.subr.bf16.mxu0 0
        %986 = vmatpush2.bf16.msra.mxu0 0
        %987 = vmatprep.subr.bf16.mxu0 0
        %988 = vmatpush2.bf16.msra.mxu0 0
        %989 = vmatprep.subr.bf16.mxu0 0
        %990 = vmatpush2.bf16.msra.mxu0 0
        %991 = vmatprep.subr.bf16.mxu0 0
        %992 = vmatpush2.bf16.msra.mxu0 0
        %993 = vmatprep.subr.bf16.mxu0 0
        %994 = vmatpush2.bf16.msra.mxu0 0
        %995 = vmatprep.mubr.bf16.mxu0 0
        %996 = vmatmul.mubr.bf16.gmra.mxu0 %v921
        %v997 = vpop.f32.mrf.mxu0
        %v998 = vadd.f32 %v957, %v997
        %v999 = vpop.f32.mrf.mxu0
        %v1000 = vpop.f32.mrf.mxu0
        %v1001 = vadd.f32 %v960, %v1000
        %v1002 = vpop.f32.mrf.mxu0
        %1003 = vdwg.mxu0
        %v1004 = vsel %vm390, %v1001, 0.0
        %v1007 = vrot.slane %v998, 1
        %v1008 = vrot.slane %v1004, 1
        %v1009 = vsel %vm382, %v1007, %v1008
        %v1012 = vmax.f32 %v998, %v1009
        %v1013 = vmax.f32 %v1004, %v1008
        %v1014 = vrot.slane %v998, 2
        %v1015 = vrot.slane %v1004, 2
        %v1016 = vsel %vm390, %v1014, %v1015
        %v1019 = vmax.f32 %v1012, %v1016
        %v1020 = vmax.f32 %v1013, %v1015
        %v1022 = vrot.slane %v1019, 1
        %v1024 = vrot.slane %v1019, 2
        %v1026 = vrot.slane %v1019, 3
        %v1029 = vrot.slane %v1020, 4
        %v1031 = vrot.slane %v1020, 5
        %v1033 = vrot.slane %v1020, 6
        %v1035 = vsel %vm637, %v1019, %v1022
        %vm1036 = vcmask 1041408
        %v1037 = vsel %vm1036, %v1035, %v1024
        %vm1038 = vcmask 1042432
        %v1039 = vsel %vm1038, %v1037, %v1026
        %vm1040 = vcmask 1043456
        %v1041 = vsel %vm1040, %v1039, %v1029
        %vm1042 = vcmask 1044480
        %v1043 = vsel %vm1042, %v1041, %v1031
        %v1044 = vsel %vm390, %v1043, %v1033
        %v1045 = vsel %vm382, %v1044, 0.0
        %v1046 = vmax.f32 %v1045, 0.0
        %v1048 = vrot.slane %v1046, 7
        %v1050 = vsel %vm637, 0.0, %v1048
        %v1052 = vrot.slane %v1050, 1
        %v1053 = vsel %vm382, %v1052, %v386
        %v1054 = vsel %vm382, %v386, %v386
        %v1057 = vrot.slane %v1050, 2
        %v1058 = vsel %vm390, %v1057, %v394
        %v1059 = vsel %vm390, %v394, %v394
        %v1062 = vpack.c.bf16 0.0, %v1050
        %v1063 = vpack.c.bf16 %v1054, %v1053
        %v1064 = vpack.c.bf16 %v1059, %v1058
        %1065 = vmatprep.subr.bf16.mxu0 0
        %1066 = vmatpush1.bf16.msra.mxu0 %v771
        %1067 = vmatprep.subr.bf16.mxu0 0
        %1068 = vmatpush1.bf16.msra.mxu0 %v770
        %1069 = vmatprep.subr.bf16.mxu0 0
        %1070 = vmatpush1.bf16.msra.mxu0 %v769
        %1071 = vmatprep.subr.bf16.mxu0 0
        %1072 = vmatpush1.bf16.msra.mxu0 %v768
        %1073 = vmatprep.subr.bf16.mxu0 0
        %1074 = vmatpush1.bf16.msra.mxu0 %v767
        %1075 = vmatprep.subr.bf16.mxu0 0
        %1076 = vmatpush1.bf16.msra.mxu0 %v766
        %1077 = vmatprep.subr.bf16.mxu0 0
        %1078 = vmatpush1.bf16.msra.mxu0 %v765
        %1079 = vmatprep.subr.bf16.mxu0 0
        %1080 = vmatpush1.bf16.msra.mxu0 %v764
        %1081 = vmatprep.subr.bf16.mxu0 0
        %1082 = vmatpush2.bf16.msra.mxu0 %v779
        %1083 = vmatprep.subr.bf16.mxu0 0
        %1084 = vmatpush2.bf16.msra.mxu0 %v778
        %1085 = vmatprep.subr.bf16.mxu0 0
        %1086 = vmatpush2.bf16.msra.mxu0 %v777
        %1087 = vmatprep.subr.bf16.mxu0 0
        %1088 = vmatpush2.bf16.msra.mxu0 %v776
        %1089 = vmatprep.subr.bf16.mxu0 0
        %1090 = vmatpush2.bf16.msra.mxu0 %v775
        %1091 = vmatprep.subr.bf16.mxu0 0
        %1092 = vmatpush2.bf16.msra.mxu0 %v774
        %1093 = vmatprep.subr.bf16.mxu0 0
        %1094 = vmatpush2.bf16.msra.mxu0 %v773
        %1095 = vmatprep.subr.bf16.mxu0 0
        %1096 = vmatpush2.bf16.msra.mxu0 %v772
        %1097 = vmatprep.mubr.bf16.mxu0 %v1063
        %1098 = vmatmul.mubr.bf16.gmra.mxu0 %v1062
        %v1099 = vpop.f32.mrf.mxu0
        %v1100 = vadd.f32 %v666, %v1099
        %v1101 = vpop.f32.mrf.mxu0
        %v1102 = vpop.f32.mrf.mxu0
        %v1103 = vpop.f32.mrf.mxu0
        %1104 = vdwg.mxu0
        %1105 = vmatprep.subr.bf16.mxu0 0
        %1106 = vmatpush1.bf16.msra.mxu0 %v787
        %1107 = vmatprep.subr.bf16.mxu0 0
        %1108 = vmatpush1.bf16.msra.mxu0 %v786
        %1109 = vmatprep.subr.bf16.mxu0 0
        %1110 = vmatpush1.bf16.msra.mxu0 %v785
        %1111 = vmatprep.subr.bf16.mxu0 0
        %1112 = vmatpush1.bf16.msra.mxu0 %v784
        %1113 = vmatprep.subr.bf16.mxu0 0
        %1114 = vmatpush1.bf16.msra.mxu0 %v783
        %1115 = vmatprep.subr.bf16.mxu0 0
        %1116 = vmatpush1.bf16.msra.mxu0 %v782
        %1117 = vmatprep.subr.bf16.mxu0 0
        %1118 = vmatpush1.bf16.msra.mxu0 %v781
        %1119 = vmatprep.subr.bf16.mxu0 0
        %1120 = vmatpush1.bf16.msra.mxu0 %v780
        %1121 = vmatprep.subr.bf16.mxu0 0
        %1122 = vmatpush2.bf16.msra.mxu0 0
        %1123 = vmatprep.subr.bf16.mxu0 0
        %1124 = vmatpush2.bf16.msra.mxu0 0
        %1125 = vmatprep.subr.bf16.mxu0 0
        %1126 = vmatpush2.bf16.msra.mxu0 0
        %1127 = vmatprep.subr.bf16.mxu0 0
        %1128 = vmatpush2.bf16.msra.mxu0 0
        %1129 = vmatprep.subr.bf16.mxu0 0
        %1130 = vmatpush2.bf16.msra.mxu0 0
        %1131 = vmatprep.subr.bf16.mxu0 0
        %1132 = vmatpush2.bf16.msra.mxu0 0
        %1133 = vmatprep.subr.bf16.mxu0 0
        %1134 = vmatpush2.bf16.msra.mxu0 0
        %1135 = vmatprep.subr.bf16.mxu0 0
        %1136 = vmatpush2.bf16.msra.mxu0 0
        %1137 = vmatprep.mubr.bf16.mxu0 0
        %1138 = vmatmul.mubr.bf16.gmra.mxu0 %v1064
        %v1139 = vpop.f32.mrf.mxu0
        %v1140 = vadd.f32 %v1100, %v1139
        %v1141 = vpop.f32.mrf.mxu0
        %v1142 = vpop.f32.mrf.mxu0
        %v1143 = vpop.f32.mrf.mxu0
        %1144 = vdwg.mxu0
        %v1145 = vmax.f32 %v1140, 0.0
        %v1147 = vrot.slane %v1145, 7
        %v1149 = vsel %vm637, 0.0, %v1147
        %v1151 = vrot.slane %v1149, 1
        %v1152 = vsel %vm382, %v1151, %v386
        %v1154 = vrot.slane %v1149, 2
        %v1155 = vsel %vm390, %v1154, %v394
        %v1157 = vpack.c.bf16 0.0, %v1149
        %v1158 = vpack.c.bf16 %v1054, %v1152
        %v1159 = vpack.c.bf16 %v1059, %v1155
        %1160 = vmatprep.subr.bf16.mxu0 0
        %1161 = vmatpush1.bf16.msra.mxu0 %v771
        %1162 = vmatprep.subr.bf16.mxu0 0
        %1163 = vmatpush1.bf16.msra.mxu0 %v770
        %1164 = vmatprep.subr.bf16.mxu0 0
        %1165 = vmatpush1.bf16.msra.mxu0 %v769
        %1166 = vmatprep.subr.bf16.mxu0 0
        %1167 = vmatpush1.bf16.msra.mxu0 %v768
        %1168 = vmatprep.subr.bf16.mxu0 0
        %1169 = vmatpush1.bf16.msra.mxu0 %v767
        %1170 = vmatprep.subr.bf16.mxu0 0
        %1171 = vmatpush1.bf16.msra.mxu0 %v766
        %1172 = vmatprep.subr.bf16.mxu0 0
        %1173 = vmatpush1.bf16.msra.mxu0 %v765
        %1174 = vmatprep.subr.bf16.mxu0 0
        %1175 = vmatpush1.bf16.msra.mxu0 %v764
        %1176 = vmatprep.subr.bf16.mxu0 0
        %1177 = vmatpush2.bf16.msra.mxu0 %v779
        %1178 = vmatprep.subr.bf16.mxu0 0
        %1179 = vmatpush2.bf16.msra.mxu0 %v778
        %1180 = vmatprep.subr.bf16.mxu0 0
        %1181 = vmatpush2.bf16.msra.mxu0 %v777
        %1182 = vmatprep.subr.bf16.mxu0 0
        %1183 = vmatpush2.bf16.msra.mxu0 %v776
        %1184 = vmatprep.subr.bf16.mxu0 0
        %1185 = vmatpush2.bf16.msra.mxu0 %v775
        %1186 = vmatprep.subr.bf16.mxu0 0
        %1187 = vmatpush2.bf16.msra.mxu0 %v774
        %1188 = vmatprep.subr.bf16.mxu0 0
        %1189 = vmatpush2.bf16.msra.mxu0 %v773
        %1190 = vmatprep.subr.bf16.mxu0 0
        %1191 = vmatpush2.bf16.msra.mxu0 %v772
        %1192 = vmatprep.mubr.bf16.mxu0 %v1158
        %1193 = vmatmul.mubr.bf16.gmra.mxu0 %v1157
        %v1194 = vpop.f32.mrf.mxu0
        %v1195 = vadd.f32 %v666, %v1194
        %v1196 = vpop.f32.mrf.mxu0
        %v1197 = vpop.f32.mrf.mxu0
        %v1198 = vpop.f32.mrf.mxu0
        %1199 = vdwg.mxu0
        %1200 = vmatprep.subr.bf16.mxu0 0
        %1201 = vmatpush1.bf16.msra.mxu0 %v787
        %1202 = vmatprep.subr.bf16.mxu0 0
        %1203 = vmatpush1.bf16.msra.mxu0 %v786
        %1204 = vmatprep.subr.bf16.mxu0 0
        %1205 = vmatpush1.bf16.msra.mxu0 %v785
        %1206 = vmatprep.subr.bf16.mxu0 0
        %1207 = vmatpush1.bf16.msra.mxu0 %v784
        %1208 = vmatprep.subr.bf16.mxu0 0
        %1209 = vmatpush1.bf16.msra.mxu0 %v783
        %1210 = vmatprep.subr.bf16.mxu0 0
        %1211 = vmatpush1.bf16.msra.mxu0 %v782
        %1212 = vmatprep.subr.bf16.mxu0 0
        %1213 = vmatpush1.bf16.msra.mxu0 %v781
        %1214 = vmatprep.subr.bf16.mxu0 0
        %1215 = vmatpush1.bf16.msra.mxu0 %v780
        %1216 = vmatprep.subr.bf16.mxu0 0
        %1217 = vmatpush2.bf16.msra.mxu0 0
        %1218 = vmatprep.subr.bf16.mxu0 0
        %1219 = vmatpush2.bf16.msra.mxu0 0
        %1220 = vmatprep.subr.bf16.mxu0 0
        %1221 = vmatpush2.bf16.msra.mxu0 0
        %1222 = vmatprep.subr.bf16.mxu0 0
        %1223 = vmatpush2.bf16.msra.mxu0 0
        %1224 = vmatprep.subr.bf16.mxu0 0
        %1225 = vmatpush2.bf16.msra.mxu0 0
        %1226 = vmatprep.subr.bf16.mxu0 0
        %1227 = vmatpush2.bf16.msra.mxu0 0
        %1228 = vmatprep.subr.bf16.mxu0 0
        %1229 = vmatpush2.bf16.msra.mxu0 0
        %1230 = vmatprep.subr.bf16.mxu0 0
        %1231 = vmatpush2.bf16.msra.mxu0 0
        %1232 = vmatprep.mubr.bf16.mxu0 0
        %1233 = vmatmul.mubr.bf16.gmra.mxu0 %v1159
        %v1234 = vpop.f32.mrf.mxu0
        %v1235 = vadd.f32 %v1195, %v1234
        %v1236 = vpop.f32.mrf.mxu0
        %v1237 = vpop.f32.mrf.mxu0
        %v1238 = vpop.f32.mrf.mxu0
        %1239 = vdwg.mxu0
        %v1240 = vadd.f32 %v1235, %v1045
        %v1242 = vrot.slane %v1240, 1
        %v1244 = vmax.f32 %v1240, %v1242
        %v1245 = vrot.slane %v1240, 2
        %v1247 = vmax.f32 %v1244, %v1245
        %v1249 = vrot.slane %v1247, 1
        %v1251 = vrot.slane %v1247, 2
        %v1253 = vsel %vm637, %v1247, %v1249
        %v1254 = vsel %vm1036, %v1253, %v1251
        %v1255 = vsel %vm1038, %v1254, 0.0
        %v1256 = vmax.f32 %v1255, 0.0
        %v1258 = vrot.slane %v1256, 7
        %v1260 = vsel %vm637, 0.0, %v1258
        %v1261 = vsel %vm1040, %v1260, 0.0
        %v1263 = vrot.slane %v1261, 1
        %v1264 = vsel %vm382, %v1263, %v386
        %v1266 = vrot.slane %v1261, 2
        %v1267 = vsel %vm390, %v1266, %v394
        %v1269 = vpack.c.bf16 0.0, %v1261
        %v1270 = vpack.c.bf16 %v1054, %v1264
        %v1271 = vpack.c.bf16 %v1059, %v1267
        %1272 = vmatprep.subr.bf16.mxu0 0
        %1273 = vmatpush1.bf16.msra.mxu0 %v771
        %1274 = vmatprep.subr.bf16.mxu0 0
        %1275 = vmatpush1.bf16.msra.mxu0 %v770
        %1276 = vmatprep.subr.bf16.mxu0 0
        %1277 = vmatpush1.bf16.msra.mxu0 %v769
        %1278 = vmatprep.subr.bf16.mxu0 0
        %1279 = vmatpush1.bf16.msra.mxu0 %v768
        %1280 = vmatprep.subr.bf16.mxu0 0
        %1281 = vmatpush1.bf16.msra.mxu0 %v767
        %1282 = vmatprep.subr.bf16.mxu0 0
        %1283 = vmatpush1.bf16.msra.mxu0 %v766
        %1284 = vmatprep.subr.bf16.mxu0 0
        %1285 = vmatpush1.bf16.msra.mxu0 %v765
        %1286 = vmatprep.subr.bf16.mxu0 0
        %1287 = vmatpush1.bf16.msra.mxu0 %v764
        %1288 = vmatprep.subr.bf16.mxu0 0
        %1289 = vmatpush2.bf16.msra.mxu0 %v779
        %1290 = vmatprep.subr.bf16.mxu0 0
        %1291 = vmatpush2.bf16.msra.mxu0 %v778
        %1292 = vmatprep.subr.bf16.mxu0 0
        %1293 = vmatpush2.bf16.msra.mxu0 %v777
        %1294 = vmatprep.subr.bf16.mxu0 0
        %1295 = vmatpush2.bf16.msra.mxu0 %v776
        %1296 = vmatprep.subr.bf16.mxu0 0
        %1297 = vmatpush2.bf16.msra.mxu0 %v775
        %1298 = vmatprep.subr.bf16.mxu0 0
        %1299 = vmatpush2.bf16.msra.mxu0 %v774
        %1300 = vmatprep.subr.bf16.mxu0 0
        %1301 = vmatpush2.bf16.msra.mxu0 %v773
        %1302 = vmatprep.subr.bf16.mxu0 0
        %1303 = vmatpush2.bf16.msra.mxu0 %v772
        %1304 = vmatprep.mubr.bf16.mxu0 %v1270
        %1305 = vmatmul.mubr.bf16.gmra.mxu0 %v1269
        %v1306 = vpop.f32.mrf.mxu0
        %v1307 = vadd.f32 %v666, %v1306
        %v1308 = vpop.f32.mrf.mxu0
        %v1309 = vpop.f32.mrf.mxu0
        %v1310 = vpop.f32.mrf.mxu0
        %1311 = vdwg.mxu0
        %1312 = vmatprep.subr.bf16.mxu0 0
        %1313 = vmatpush1.bf16.msra.mxu0 %v787
        %1314 = vmatprep.subr.bf16.mxu0 0
        %1315 = vmatpush1.bf16.msra.mxu0 %v786
        %1316 = vmatprep.subr.bf16.mxu0 0
        %1317 = vmatpush1.bf16.msra.mxu0 %v785
        %1318 = vmatprep.subr.bf16.mxu0 0
        %1319 = vmatpush1.bf16.msra.mxu0 %v784
        %1320 = vmatprep.subr.bf16.mxu0 0
        %1321 = vmatpush1.bf16.msra.mxu0 %v783
        %1322 = vmatprep.subr.bf16.mxu0 0
        %1323 = vmatpush1.bf16.msra.mxu0 %v782
        %1324 = vmatprep.subr.bf16.mxu0 0
        %1325 = vmatpush1.bf16.msra.mxu0 %v781
        %1326 = vmatprep.subr.bf16.mxu0 0
        %1327 = vmatpush1.bf16.msra.mxu0 %v780
        %1328 = vmatprep.subr.bf16.mxu0 0
        %1329 = vmatpush2.bf16.msra.mxu0 0
        %1330 = vmatprep.subr.bf16.mxu0 0
        %1331 = vmatpush2.bf16.msra.mxu0 0
        %1332 = vmatprep.subr.bf16.mxu0 0
        %1333 = vmatpush2.bf16.msra.mxu0 0
        %1334 = vmatprep.subr.bf16.mxu0 0
        %1335 = vmatpush2.bf16.msra.mxu0 0
        %1336 = vmatprep.subr.bf16.mxu0 0
        %1337 = vmatpush2.bf16.msra.mxu0 0
        %1338 = vmatprep.subr.bf16.mxu0 0
        %1339 = vmatpush2.bf16.msra.mxu0 0
        %1340 = vmatprep.subr.bf16.mxu0 0
        %1341 = vmatpush2.bf16.msra.mxu0 0
        %1342 = vmatprep.subr.bf16.mxu0 0
        %1343 = vmatpush2.bf16.msra.mxu0 0
        %1344 = vmatprep.mubr.bf16.mxu0 0
        %1345 = vmatmul.mubr.bf16.gmra.mxu0 %v1271
        %v1346 = vpop.f32.mrf.mxu0
        %v1347 = vadd.f32 %v1307, %v1346
        %v1348 = vpop.f32.mrf.mxu0
        %v1349 = vpop.f32.mrf.mxu0
        %v1350 = vpop.f32.mrf.mxu0
        %1351 = vdwg.mxu0
        %v1352 = vmax.f32 %v1347, 0.0
        %v1354 = vrot.slane %v1352, 7
        %v1356 = vsel %vm637, 0.0, %v1354
        %v1357 = vsel %vm1040, %v1356, 0.0
        %v1359 = vrot.slane %v1357, 1
        %v1360 = vsel %vm382, %v1359, %v386
        %v1362 = vrot.slane %v1357, 2
        %v1363 = vsel %vm390, %v1362, %v394
        %v1365 = vpack.c.bf16 0.0, %v1357
        %v1366 = vpack.c.bf16 %v1054, %v1360
        %v1367 = vpack.c.bf16 %v1059, %v1363
        %1368 = vmatprep.subr.bf16.mxu0 0
        %1369 = vmatpush1.bf16.msra.mxu0 %v771
        %1370 = vmatprep.subr.bf16.mxu0 0
        %1371 = vmatpush1.bf16.msra.mxu0 %v770
        %1372 = vmatprep.subr.bf16.mxu0 0
        %1373 = vmatpush1.bf16.msra.mxu0 %v769
        %1374 = vmatprep.subr.bf16.mxu0 0
        %1375 = vmatpush1.bf16.msra.mxu0 %v768
        %1376 = vmatprep.subr.bf16.mxu0 0
        %1377 = vmatpush1.bf16.msra.mxu0 %v767
        %1378 = vmatprep.subr.bf16.mxu0 0
        %1379 = vmatpush1.bf16.msra.mxu0 %v766
        %1380 = vmatprep.subr.bf16.mxu0 0
        %1381 = vmatpush1.bf16.msra.mxu0 %v765
        %1382 = vmatprep.subr.bf16.mxu0 0
        %1383 = vmatpush1.bf16.msra.mxu0 %v764
        %1384 = vmatprep.subr.bf16.mxu0 0
        %1385 = vmatpush2.bf16.msra.mxu0 %v779
        %1386 = vmatprep.subr.bf16.mxu0 0
        %1387 = vmatpush2.bf16.msra.mxu0 %v778
        %1388 = vmatprep.subr.bf16.mxu0 0
        %1389 = vmatpush2.bf16.msra.mxu0 %v777
        %1390 = vmatprep.subr.bf16.mxu0 0
        %1391 = vmatpush2.bf16.msra.mxu0 %v776
        %1392 = vmatprep.subr.bf16.mxu0 0
        %1393 = vmatpush2.bf16.msra.mxu0 %v775
        %1394 = vmatprep.subr.bf16.mxu0 0
        %1395 = vmatpush2.bf16.msra.mxu0 %v774
        %1396 = vmatprep.subr.bf16.mxu0 0
        %1397 = vmatpush2.bf16.msra.mxu0 %v773
        %1398 = vmatprep.subr.bf16.mxu0 0
        %1399 = vmatpush2.bf16.msra.mxu0 %v772
        %1400 = vmatprep.mubr.bf16.mxu0 %v1366
        %1401 = vmatmul.mubr.bf16.gmra.mxu0 %v1365
        %v1402 = vpop.f32.mrf.mxu0
        %v1403 = vadd.f32 %v666, %v1402
        %v1404 = vpop.f32.mrf.mxu0
        %v1405 = vpop.f32.mrf.mxu0
        %v1406 = vpop.f32.mrf.mxu0
        %1407 = vdwg.mxu0
        %1408 = vmatprep.subr.bf16.mxu0 0
        %1409 = vmatpush1.bf16.msra.mxu0 %v787
        %1410 = vmatprep.subr.bf16.mxu0 0
        %1411 = vmatpush1.bf16.msra.mxu0 %v786
        %1412 = vmatprep.subr.bf16.mxu0 0
        %1413 = vmatpush1.bf16.msra.mxu0 %v785
        %1414 = vmatprep.subr.bf16.mxu0 0
        %1415 = vmatpush1.bf16.msra.mxu0 %v784
        %1416 = vmatprep.subr.bf16.mxu0 0
        %1417 = vmatpush1.bf16.msra.mxu0 %v783
        %1418 = vmatprep.subr.bf16.mxu0 0
        %1419 = vmatpush1.bf16.msra.mxu0 %v782
        %1420 = vmatprep.subr.bf16.mxu0 0
        %1421 = vmatpush1.bf16.msra.mxu0 %v781
        %1422 = vmatprep.subr.bf16.mxu0 0
        %1423 = vmatpush1.bf16.msra.mxu0 %v780
        %1424 = vmatprep.subr.bf16.mxu0 0
        %1425 = vmatpush2.bf16.msra.mxu0 0
        %1426 = vmatprep.subr.bf16.mxu0 0
        %1427 = vmatpush2.bf16.msra.mxu0 0
        %1428 = vmatprep.subr.bf16.mxu0 0
        %1429 = vmatpush2.bf16.msra.mxu0 0
        %1430 = vmatprep.subr.bf16.mxu0 0
        %1431 = vmatpush2.bf16.msra.mxu0 0
        %1432 = vmatprep.subr.bf16.mxu0 0
        %1433 = vmatpush2.bf16.msra.mxu0 0
        %1434 = vmatprep.subr.bf16.mxu0 0
        %1435 = vmatpush2.bf16.msra.mxu0 0
        %1436 = vmatprep.subr.bf16.mxu0 0
        %1437 = vmatpush2.bf16.msra.mxu0 0
        %1438 = vmatprep.subr.bf16.mxu0 0
        %1439 = vmatpush2.bf16.msra.mxu0 0
        %1440 = vmatprep.mubr.bf16.mxu0 0
        %1441 = vmatmul.mubr.bf16.gmra.mxu0 %v1367
        %v1442 = vpop.f32.mrf.mxu0
        %v1443 = vadd.f32 %v1403, %v1442
        %v1444 = vpop.f32.mrf.mxu0
        %v1445 = vpop.f32.mrf.mxu0
        %v1446 = vpop.f32.mrf.mxu0
        %1447 = vdwg.mxu0
        %v1448 = vadd.f32 %v1443, %v1255
        %v1450 = vrot.slane %v1448, 1
        %v1452 = vmax.f32 %v1448, %v1450
        %v1453 = vrot.slane %v1448, 2
        %v1455 = vmax.f32 %v1452, %v1453
        %v1456 = vsel %vm637, %v1455, 0.0
        %v1457 = vmax.f32 %v1456, 0.0
        %v1459 = vrot.slane %v1457, 7
        %v1461 = vsel %vm637, 0.0, %v1459
        %v1462 = vsel %vm1036, %v1461, 0.0
        %v1464 = vrot.slane %v1462, 1
        %v1465 = vsel %vm382, %v1464, %v386
        %v1467 = vrot.slane %v1462, 2
        %v1468 = vsel %vm390, %v1467, %v394
        %v1470 = vpack.c.bf16 0.0, %v1462
        %v1471 = vpack.c.bf16 %v1054, %v1465
        %v1472 = vpack.c.bf16 %v1059, %v1468
        %1473 = vmatprep.subr.bf16.mxu0 0
        %1474 = vmatpush1.bf16.msra.mxu0 %v771
        %1475 = vmatprep.subr.bf16.mxu0 0
        %1476 = vmatpush1.bf16.msra.mxu0 %v770
        %1477 = vmatprep.subr.bf16.mxu0 0
        %1478 = vmatpush1.bf16.msra.mxu0 %v769
        %1479 = vmatprep.subr.bf16.mxu0 0
        %1480 = vmatpush1.bf16.msra.mxu0 %v768
        %1481 = vmatprep.subr.bf16.mxu0 0
        %1482 = vmatpush1.bf16.msra.mxu0 %v767
        %1483 = vmatprep.subr.bf16.mxu0 0
        %1484 = vmatpush1.bf16.msra.mxu0 %v766
        %1485 = vmatprep.subr.bf16.mxu0 0
        %1486 = vmatpush1.bf16.msra.mxu0 %v765
        %1487 = vmatprep.subr.bf16.mxu0 0
        %1488 = vmatpush1.bf16.msra.mxu0 %v764
        %1489 = vmatprep.subr.bf16.mxu0 0
        %1490 = vmatpush2.bf16.msra.mxu0 %v779
        %1491 = vmatprep.subr.bf16.mxu0 0
        %1492 = vmatpush2.bf16.msra.mxu0 %v778
        %1493 = vmatprep.subr.bf16.mxu0 0
        %1494 = vmatpush2.bf16.msra.mxu0 %v777
        %1495 = vmatprep.subr.bf16.mxu0 0
        %1496 = vmatpush2.bf16.msra.mxu0 %v776
        %1497 = vmatprep.subr.bf16.mxu0 0
        %1498 = vmatpush2.bf16.msra.mxu0 %v775
        %1499 = vmatprep.subr.bf16.mxu0 0
        %1500 = vmatpush2.bf16.msra.mxu0 %v774
        %1501 = vmatprep.subr.bf16.mxu0 0
        %1502 = vmatpush2.bf16.msra.mxu0 %v773
        %1503 = vmatprep.subr.bf16.mxu0 0
        %1504 = vmatpush2.bf16.msra.mxu0 %v772
        %1505 = vmatprep.mubr.bf16.mxu0 %v1471
        %1506 = vmatmul.mubr.bf16.gmra.mxu0 %v1470
        %v1507 = vpop.f32.mrf.mxu0
        %v1508 = vadd.f32 %v666, %v1507
        %v1509 = vpop.f32.mrf.mxu0
        %v1510 = vpop.f32.mrf.mxu0
        %v1511 = vpop.f32.mrf.mxu0
        %1512 = vdwg.mxu0
        %1513 = vmatprep.subr.bf16.mxu0 0
        %1514 = vmatpush1.bf16.msra.mxu0 %v787
        %1515 = vmatprep.subr.bf16.mxu0 0
        %1516 = vmatpush1.bf16.msra.mxu0 %v786
        %1517 = vmatprep.subr.bf16.mxu0 0
        %1518 = vmatpush1.bf16.msra.mxu0 %v785
        %1519 = vmatprep.subr.bf16.mxu0 0
        %1520 = vmatpush1.bf16.msra.mxu0 %v784
        %1521 = vmatprep.subr.bf16.mxu0 0
        %1522 = vmatpush1.bf16.msra.mxu0 %v783
        %1523 = vmatprep.subr.bf16.mxu0 0
        %1524 = vmatpush1.bf16.msra.mxu0 %v782
        %1525 = vmatprep.subr.bf16.mxu0 0
        %1526 = vmatpush1.bf16.msra.mxu0 %v781
        %1527 = vmatprep.subr.bf16.mxu0 0
        %1528 = vmatpush1.bf16.msra.mxu0 %v780
        %1529 = vmatprep.subr.bf16.mxu0 0
        %1530 = vmatpush2.bf16.msra.mxu0 0
        %1531 = vmatprep.subr.bf16.mxu0 0
        %1532 = vmatpush2.bf16.msra.mxu0 0
        %1533 = vmatprep.subr.bf16.mxu0 0
        %1534 = vmatpush2.bf16.msra.mxu0 0
        %1535 = vmatprep.subr.bf16.mxu0 0
        %1536 = vmatpush2.bf16.msra.mxu0 0
        %1537 = vmatprep.subr.bf16.mxu0 0
        %1538 = vmatpush2.bf16.msra.mxu0 0
        %1539 = vmatprep.subr.bf16.mxu0 0
        %1540 = vmatpush2.bf16.msra.mxu0 0
        %1541 = vmatprep.subr.bf16.mxu0 0
        %1542 = vmatpush2.bf16.msra.mxu0 0
        %1543 = vmatprep.subr.bf16.mxu0 0
        %1544 = vmatpush2.bf16.msra.mxu0 0
        %1545 = vmatprep.mubr.bf16.mxu0 0
        %1546 = vmatmul.mubr.bf16.gmra.mxu0 %v1472
        %v1547 = vpop.f32.mrf.mxu0
        %v1548 = vadd.f32 %v1508, %v1547
        %v1549 = vpop.f32.mrf.mxu0
        %v1550 = vpop.f32.mrf.mxu0
        %v1551 = vpop.f32.mrf.mxu0
        %1552 = vdwg.mxu0
        %v1553 = vmax.f32 %v1548, 0.0
        %v1555 = vrot.slane %v1553, 7
        %v1557 = vsel %vm637, 0.0, %v1555
        %v1558 = vsel %vm1036, %v1557, 0.0
        %v1560 = vrot.slane %v1558, 1
        %v1561 = vsel %vm382, %v1560, %v386
        %v1563 = vrot.slane %v1558, 2
        %v1564 = vsel %vm390, %v1563, %v394
        %v1566 = vpack.c.bf16 0.0, %v1558
        %v1567 = vpack.c.bf16 %v1054, %v1561
        %v1568 = vpack.c.bf16 %v1059, %v1564
        %1569 = vmatprep.subr.bf16.mxu0 0
        %1570 = vmatpush1.bf16.msra.mxu0 %v771
        %1571 = vmatprep.subr.bf16.mxu0 0
        %1572 = vmatpush1.bf16.msra.mxu0 %v770
        %1573 = vmatprep.subr.bf16.mxu0 0
        %1574 = vmatpush1.bf16.msra.mxu0 %v769
        %1575 = vmatprep.subr.bf16.mxu0 0
        %1576 = vmatpush1.bf16.msra.mxu0 %v768
        %1577 = vmatprep.subr.bf16.mxu0 0
        %1578 = vmatpush1.bf16.msra.mxu0 %v767
        %1579 = vmatprep.subr.bf16.mxu0 0
        %1580 = vmatpush1.bf16.msra.mxu0 %v766
        %1581 = vmatprep.subr.bf16.mxu0 0
        %1582 = vmatpush1.bf16.msra.mxu0 %v765
        %1583 = vmatprep.subr.bf16.mxu0 0
        %1584 = vmatpush1.bf16.msra.mxu0 %v764
        %1585 = vmatprep.subr.bf16.mxu0 0
        %1586 = vmatpush2.bf16.msra.mxu0 %v779
        %1587 = vmatprep.subr.bf16.mxu0 0
        %1588 = vmatpush2.bf16.msra.mxu0 %v778
        %1589 = vmatprep.subr.bf16.mxu0 0
        %1590 = vmatpush2.bf16.msra.mxu0 %v777
        %1591 = vmatprep.subr.bf16.mxu0 0
        %1592 = vmatpush2.bf16.msra.mxu0 %v776
        %1593 = vmatprep.subr.bf16.mxu0 0
        %1594 = vmatpush2.bf16.msra.mxu0 %v775
        %1595 = vmatprep.subr.bf16.mxu0 0
        %1596 = vmatpush2.bf16.msra.mxu0 %v774
        %1597 = vmatprep.subr.bf16.mxu0 0
        %1598 = vmatpush2.bf16.msra.mxu0 %v773
        %1599 = vmatprep.subr.bf16.mxu0 0
        %1600 = vmatpush2.bf16.msra.mxu0 %v772
        %1601 = vmatprep.mubr.bf16.mxu0 %v1567
        %1602 = vmatmul.mubr.bf16.gmra.mxu0 %v1566
        %v1603 = vpop.f32.mrf.mxu0
        %v1604 = vadd.f32 %v666, %v1603
        %v1605 = vpop.f32.mrf.mxu0
        %v1606 = vpop.f32.mrf.mxu0
        %v1607 = vadd.f32 %v666, %v1606
        %v1608 = vpop.f32.mrf.mxu0
        %1609 = vdwg.mxu0
        %1610 = vmatprep.subr.bf16.mxu0 0
        %1611 = vmatpush1.bf16.msra.mxu0 %v787
        %1612 = vmatprep.subr.bf16.mxu0 0
        %1613 = vmatpush1.bf16.msra.mxu0 %v786
        %1614 = vmatprep.subr.bf16.mxu0 0
        %1615 = vmatpush1.bf16.msra.mxu0 %v785
        %1616 = vmatprep.subr.bf16.mxu0 0
        %1617 = vmatpush1.bf16.msra.mxu0 %v784
        %1618 = vmatprep.subr.bf16.mxu0 0
        %1619 = vmatpush1.bf16.msra.mxu0 %v783
        %1620 = vmatprep.subr.bf16.mxu0 0
        %1621 = vmatpush1.bf16.msra.mxu0 %v782
        %1622 = vmatprep.subr.bf16.mxu0 0
        %1623 = vmatpush1.bf16.msra.mxu0 %v781
        %1624 = vmatprep.subr.bf16.mxu0 0
        %1625 = vmatpush1.bf16.msra.mxu0 %v780
        %1626 = vmatprep.subr.bf16.mxu0 0
        %1627 = vmatpush2.bf16.msra.mxu0 0
        %1628 = vmatprep.subr.bf16.mxu0 0
        %1629 = vmatpush2.bf16.msra.mxu0 0
        %1630 = vmatprep.subr.bf16.mxu0 0
        %1631 = vmatpush2.bf16.msra.mxu0 0
        %1632 = vmatprep.subr.bf16.mxu0 0
        %1633 = vmatpush2.bf16.msra.mxu0 0
        %1634 = vmatprep.subr.bf16.mxu0 0
        %1635 = vmatpush2.bf16.msra.mxu0 0
        %1636 = vmatprep.subr.bf16.mxu0 0
        %1637 = vmatpush2.bf16.msra.mxu0 0
        %1638 = vmatprep.subr.bf16.mxu0 0
        %1639 = vmatpush2.bf16.msra.mxu0 0
        %1640 = vmatprep.subr.bf16.mxu0 0
        %1641 = vmatpush2.bf16.msra.mxu0 0
        %1642 = vmatprep.mubr.bf16.mxu0 0
        %1643 = vmatmul.mubr.bf16.gmra.mxu0 %v1568
        %v1644 = vpop.f32.mrf.mxu0
        %v1645 = vadd.f32 %v1604, %v1644
        %v1646 = vpop.f32.mrf.mxu0
        %v1647 = vpop.f32.mrf.mxu0
        %v1648 = vadd.f32 %v1607, %v1647
        %v1649 = vpop.f32.mrf.mxu0
        %1650 = vdwg.mxu0
        %v1651 = vadd.f32 %v1645, %v1456
        %v1652 = vadd.f32 %v1648, 0.0
        %v1653 = vpack.c.bf16 %v1652, %v1651
        %v1654 = vld [vmem:[%s5] sm:$0xf]
        %v1655 = vld [vmem:[%s5 + $0x4] sm:$0xf]
        %v1656 = vld [vmem:[%s5 + $0x8] sm:$0xf]
        %v1657 = vld [vmem:[%s5 + $0xc] sm:$0xf]
        %v1658 = vld [vmem:[%s5 + $0x10] sm:$0xf]
        %v1659 = vld [vmem:[%s5 + $0x14] sm:$0xf]
        %v1660 = vld [vmem:[%s5 + $0x18] sm:$0xf]
        %v1661 = vld [vmem:[%s5 + $0x1c] sm:$0xf]
        %v1662 = vld [vmem:[%s5 + $0x20] sm:$0xf]
        %v1663 = vld [vmem:[%s5 + $0x24] sm:$0xf]
        %v1664 = vld [vmem:[%s5 + $0x28] sm:$0xf]
        %v1665 = vld [vmem:[%s5 + $0x2c] sm:$0xf]
        %v1666 = vld [vmem:[%s5 + $0x30] sm:$0xf]
        %v1667 = vld [vmem:[%s5 + $0x34] sm:$0xf]
        %v1668 = vld [vmem:[%s5 + $0x38] sm:$0xf]
        %v1669 = vld [vmem:[%s5 + $0x3c] sm:$0xf]
        %v1670 = vld [vmem:[%s6] sm:$0x1]
        %v1672 = vlaneseq
        %v1673 = vshrl.u32 %v1672, 7
        %v1674 = vsub.s32 0, %v1673
        %v1675 = vrot.slane %v1670, %v1674
        %v1693 = vunpack.c.l.b16 %v1654
        %v1694 = vunpack.c.l.b16 %v1655
        %v1695 = vunpack.c.l.b16 %v1656
        %v1696 = vunpack.c.l.b16 %v1657
        %v1697 = vunpack.c.l.b16 %v1658
        %v1698 = vunpack.c.l.b16 %v1659
        %v1699 = vunpack.c.l.b16 %v1660
        %v1700 = vunpack.c.l.b16 %v1661
        %v1701 = vunpack.c.l.b16 %v1662
        %v1702 = vunpack.c.l.b16 %v1663
        %v1703 = vunpack.c.l.b16 %v1664
        %v1704 = vunpack.c.l.b16 %v1665
        %v1705 = vunpack.c.l.b16 %v1666
        %v1706 = vunpack.c.l.b16 %v1667
        %v1707 = vunpack.c.l.b16 %v1668
        %v1708 = vunpack.c.l.b16 %v1669
        %v1709 = vpack.c.b16 %v1694, %v1693
        %v1710 = vpack.c.b16 %v1696, %v1695
        %v1711 = vpack.c.b16 %v1698, %v1697
        %v1712 = vpack.c.b16 %v1700, %v1699
        %v1713 = vpack.c.b16 %v1702, %v1701
        %v1714 = vpack.c.b16 %v1704, %v1703
        %v1715 = vpack.c.b16 %v1706, %v1705
        %v1716 = vpack.c.b16 %v1708, %v1707
        %1725 = vmatprep.subr.bf16.mxu0 0
        %1726 = vmatpush1.bf16.msra.mxu0 %v1716
        %1727 = vmatprep.subr.bf16.mxu0 0
        %1728 = vmatpush1.bf16.msra.mxu0 %v1715
        %1729 = vmatprep.subr.bf16.mxu0 0
        %1730 = vmatpush1.bf16.msra.mxu0 %v1714
        %1731 = vmatprep.subr.bf16.mxu0 0
        %1732 = vmatpush1.bf16.msra.mxu0 %v1713
        %1733 = vmatprep.subr.bf16.mxu0 0
        %1734 = vmatpush1.bf16.msra.mxu0 %v1712
        %1735 = vmatprep.subr.bf16.mxu0 0
        %1736 = vmatpush1.bf16.msra.mxu0 %v1711
        %1737 = vmatprep.subr.bf16.mxu0 0
        %1738 = vmatpush1.bf16.msra.mxu0 %v1710
        %1739 = vmatprep.subr.bf16.mxu0 0
        %1740 = vmatpush1.bf16.msra.mxu0 %v1709
        %1741 = vmatprep.subr.bf16.mxu0 0
        %1742 = vmatpush2.bf16.msra.mxu0 0
        %1743 = vmatprep.subr.bf16.mxu0 0
        %1744 = vmatpush2.bf16.msra.mxu0 0
        %1745 = vmatprep.subr.bf16.mxu0 0
        %1746 = vmatpush2.bf16.msra.mxu0 0
        %1747 = vmatprep.subr.bf16.mxu0 0
        %1748 = vmatpush2.bf16.msra.mxu0 0
        %1749 = vmatprep.subr.bf16.mxu0 0
        %1750 = vmatpush2.bf16.msra.mxu0 0
        %1751 = vmatprep.subr.bf16.mxu0 0
        %1752 = vmatpush2.bf16.msra.mxu0 0
        %1753 = vmatprep.subr.bf16.mxu0 0
        %1754 = vmatpush2.bf16.msra.mxu0 0
        %1755 = vmatprep.subr.bf16.mxu0 0
        %1756 = vmatpush2.bf16.msra.mxu0 0
        %1757 = vmatprep.mubr.bf16.mxu0 0
        %1758 = vmatmul.mubr.bf16.gmra.mxu0 %v1653
        %v1759 = vpop.f32.mrf.mxu0
        %v1760 = vadd.f32 %v1675, %v1759
        %v1761 = vpop.f32.mrf.mxu0
        %v1762 = vpop.f32.mrf.mxu0
        %v1763 = vpop.f32.mrf.mxu0
        %1764 = vdwg.mxu0
        %1765 = vst [vmem:[%s270] sm:$0x1] %v1760
        %s1766 = sand.u32 %s181, 1
        %s1767 = scalar_lea.sflag [#allocation3], %s1766
        %s1768 = sand.u32 %s181, 1
        %s1769 = scalar_lea.vmem [#allocation2], %s1768
        // Predicated region
        $region49: #{model_forward.1} parent=47 // pred_check
          %p1770 = pneg %p191
        $region50: #{model_forward.1} parent=47 // pred_check_branch
          %1772 = sbr.rel (%p1770) target = $region52
        $region51: #{model_forward.1} parent=47 // pred_region
          %s1774 = ssub.s32 16, 16
          %1775 = vsyncadd %s1767, %s1774
          %s1776 = smul.addr %s21, 16
          %s1777 = scalar_lea.hbm %s7, %s1776
          %s1779 = sshll.u32 %s1769, 4
          %s1780 = int_to_ptr.vmem [resolvable:$true] %s1779
          %1782 = dma.vmem_to_hbm [thread:$0]  %s1780, 16, %s1777, %s1767
        $region52: #{model_forward.1} parent=47 // pred_fallthru
          _
      $region48: #{model_forward.1} parent=5 // pred_fallthru
        _
      %p1783 = scmp.le.s32.totalorder 2, %s16
      // Predicated region
      $region53: #{model_forward.1} parent=5 // pred_check
        %p1784 = pneg %p1783
      $region54: #{model_forward.1} parent=5 // pred_check_branch
        %1786 = sbr.rel (%p1784) target = $region56
      $region55: #{model_forward.1} parent=5 // pred_region
        %s1787 = ssub.s32 %s16, 2
        // Predicated region
        $region57: #{model_forward.1} parent=55 // pred_check
          %p1788 = pneg %p197
        $region58: #{model_forward.1} parent=55 // pred_check_branch
          %1790 = sbr.rel (%p1788) target = $region60
        $region59: #{model_forward.1} parent=55 // pred_region
          %s1791 = sand.u32 %s182, 1
          %s1792 = scalar_lea.sflag [#allocation3], %s1791
          %s1793 = sand.u32 %s182, 1
          %s1794 = scalar_lea.vmem [#allocation2], %s1793
          %1795 = dma.done %s1792, 16
        $region60: #{model_forward.1} parent=55 // pred_fallthru
          _
      $region56: #{model_forward.1} parent=5 // pred_fallthru
        _
    $region6: #{model_forward.1} parent=1 // loop_footer
      %s20 = sadd.s32 1, %s16
    $region7: #{model_forward.1} parent=1 // loop_footer_branch
      %15 = sbr.rel target = $region3
    $region8: #{model_forward.1} parent=1 // loop_exit
      _
    %1796 = vsyncpa [#allocation3], 1
    %s1797 = scalar_lea.sflag [#allocation3], 1
    %1798 = vsyncpa %s1797, 1

</llo_original>
